<compile_context>
chip_gen: v6e
topology: v6e:2x2x1
jax: 0.10.0
libtpu: 0.0.40
codegen_flags: <defaults>
</compile_context>

<pallas_src>
import functools

import jax
import jax.numpy as jnp
from jax.experimental import pallas as pl
from jax.experimental.pallas import tpu as pltpu


def _round_up(x, m):
    return ((x + m - 1) // m) * m


def _vmem_limit(estimate_bytes):
    # Headroom above the estimate, clamped so it stays inside v7x's 64 MiB VMEM.
    return int(min(56 * 2**20, max(24 * 2**20, int(1.5 * estimate_bytes) + 4 * 2**20)))


# --------------------------------------------------------------------------
# Kernel 1: fused QKV projection (one wide MXU matmul per row tile).
# --------------------------------------------------------------------------
def _qkv_proj_kernel(x_ref, w_ref, b_ref, q_ref, k_ref, v_ref):
    # x_ref: (1, tq, Ep) bf16; w_ref: (Ep, 3*Hp) bf16; b_ref: (1, 3*Hp) f32
    # q/k/v_ref: (1, tq, Hp) bf16  (head-padded, scale folded into Q)
    Hp = q_ref.shape[2]
    x = x_ref[0]
    qkv = jnp.dot(x, w_ref[...], preferred_element_type=jnp.float32) + b_ref[...]
    q_ref[0] = qkv[:, :Hp].astype(q_ref.dtype)
    k_ref[0] = qkv[:, Hp:2 * Hp].astype(k_ref.dtype)
    v_ref[0] = qkv[:, 2 * Hp:].astype(v_ref.dtype)


# --------------------------------------------------------------------------
# Kernel 2: flash-style attention (online softmax over kv tiles) fused with
# the output projection on the last kv step.
# --------------------------------------------------------------------------
def _flash_attn_kernel(q_ref, k_ref, v_ref, wp_ref, bp_ref, o_ref,
                       m_ref, l_ref, acc_ref, *, n_keys, masked):
    # q_ref: (1, tq, Hp) bf16     k_ref/v_ref: (1, tkv, Hp) bf16
    # wp_ref: (n_heads, dp, Ep) bf16     bp_ref: (1, Ep) f32
    # o_ref: (1, tq, Ep) bf16
    # scratch (persist across the kv axis): m/l (n_heads, tq, 1) f32,
    #                                       acc (n_heads, tq, dp) f32
    n_heads, dp, _ = wp_ref.shape
    tkv = k_ref.shape[1]
    ki = pl.program_id(2)

    @pl.when(ki == 0)
    def _():
        m_ref[...] = jnp.full_like(m_ref, -jnp.inf)
        l_ref[...] = jnp.zeros_like(l_ref)
        acc_ref[...] = jnp.zeros_like(acc_ref)

    if masked:
        # Padded key rows (sequence zero-padding) must not get softmax weight.
        kpos = ki * tkv + jax.lax.broadcasted_iota(jnp.int32, (1, tkv), 1)
        key_ok = kpos < n_keys                                     # (1, tkv)

    # Static unrolled loop over heads; every slice is 128-lane aligned (dp is a
    # multiple of 128), so all matmuls have contraction / width >= 128.
    for h in range(n_heads):
        sl = slice(h * dp, (h + 1) * dp)
        q_h = q_ref[0, :, sl]                                      # (tq, dp)  bf16
        k_h = k_ref[0, :, sl]                                      # (tkv, dp) bf16
        v_h = v_ref[0, :, sl]                                      # (tkv, dp) bf16

        s = jnp.einsum('qd,kd->qk', q_h, k_h,
                       preferred_element_type=jnp.float32)         # (tq, tkv) f32
        if masked:
            s = jnp.where(key_ok, s, -1e30)

        m_prev = m_ref[h]                                          # (tq, 1)
        m_new = jnp.maximum(m_prev, jnp.max(s, axis=-1, keepdims=True))
        alpha = jnp.exp(m_prev - m_new)
        p = jnp.exp(s - m_new)                                     # f32 exp (v5e-safe)
        l_ref[h] = alpha * l_ref[h] + jnp.sum(p, axis=-1, keepdims=True)
        acc_ref[h] = alpha * acc_ref[h] + jnp.dot(
            p.astype(jnp.bfloat16), v_h, preferred_element_type=jnp.float32)
        m_ref[h] = m_new

    @pl.when(ki == pl.num_programs(2) - 1)
    def _():
        tq = o_ref.shape[1]
        Ep = o_ref.shape[2]
        # Register accumulator for the per-head output-projection sum
        # (no scratch read-modify-write); normalization after A@V.
        proj = jnp.zeros((tq, Ep), jnp.float32)
        for h in range(n_heads):
            o_h = acc_ref[h] * pl.reciprocal(l_ref[h], approx=True)   # (tq, dp)
            proj = proj + jnp.dot(o_h.astype(jnp.bfloat16), wp_ref[h],
                                  preferred_element_type=jnp.float32)
        o_ref[0] = (proj + bp_ref[...]).astype(o_ref.dtype)           # bf16 store


# --------------------------------------------------------------------------
# Wrapper
# --------------------------------------------------------------------------
def attention_forward(x, params, *, n_heads, d_head, q_tile=None, kv_tile=None):
    """x: (B, N, E) float32. Returns (B, N, E). Eval-mode (no dropout)."""
    B, N, E = x.shape
    wq, bq, wk, bk, wv, bv, wp, bp = params
    # Note: the PyTorch module uses an Identity projection when
    # n_heads == 1 and d_head == E; emulate by passing wp=I, bp=0.

    # ---- layout plumbing (exact; zero-padding only) -------------------------
    dp = _round_up(d_head, 128)            # 128-lane-aligned per-head slot
    Hp = n_heads * dp
    Ep = _round_up(E, 128)                 # lane-dense embedding dim
    Np = _round_up(N, 128)                 # padded sequence length

    if q_tile is None:
        q_tile = 256 if Np % 256 == 0 else 128     # 256 fills v6e/v7x MXU
    tq = q_tile
    if kv_tile is None:
        kv_tile = 512 if Np % 512 == 0 else (256 if Np % 256 == 0 else 128)
    tkv = kv_tile
    assert Np % tq == 0 and Np % tkv == 0
    n_qt, n_kvt = Np // tq, Np // tkv

    scale = jnp.float32(d_head) ** -0.5    # folded into Q weights/bias

    def head_pad_cols(w):  # (rows, H) -> (rows, Hp): each head into a dp-wide slot
        r = w.shape[0]
        w = w.reshape(r, n_heads, d_head)
        w = jnp.pad(w, ((0, 0), (0, 0), (0, dp - d_head)))
        return w.reshape(r, Hp)

    wqkv = jnp.concatenate(
        [head_pad_cols(wq * scale), head_pad_cols(wk), head_pad_cols(wv)], axis=1)
    wqkv = jnp.pad(wqkv, ((0, Ep - E), (0, 0))).astype(jnp.bfloat16)      # (Ep, 3Hp)
    bqkv = jnp.concatenate(
        [head_pad_cols(bq * scale), head_pad_cols(bk), head_pad_cols(bv)],
        axis=1).astype(jnp.float32)                                        # (1, 3Hp)

    wp3 = wp.reshape(n_heads, d_head, E)
    wp3 = jnp.pad(wp3, ((0, 0), (0, dp - d_head), (0, Ep - E))).astype(jnp.bfloat16)
    bpp = jnp.pad(bp, ((0, 0), (0, Ep - E))).astype(jnp.float32)           # (1, Ep)

    xp = jnp.pad(x, ((0, 0), (0, Np - N), (0, Ep - E))).astype(jnp.bfloat16)

    # ---- kernel 1: QKV projection, computed exactly once --------------------
    qkv_vmem = (2 * tq * Ep * 2 + 2 * Ep * 3 * Hp * 2 + 2 * 3 * Hp * 4
                + 3 * 2 * tq * Hp * 2 + tq * 3 * Hp * 4)
    q, k, v = pl.pallas_call(
        _qkv_proj_kernel,
        out_shape=tuple(jax.ShapeDtypeStruct((B, Np, Hp), jnp.bfloat16)
                        for _ in range(3)),
        grid_spec=pltpu.PrefetchScalarGridSpec(
            num_scalar_prefetch=0,
            grid=(B, n_qt),
            in_specs=[
                pl.BlockSpec((1, tq, Ep), lambda b, i: (b, i, 0)),     # x row tile
                pl.BlockSpec((Ep, 3 * Hp), lambda b, i: (0, 0)),       # fused Wqkv
                pl.BlockSpec((1, 3 * Hp), lambda b, i: (0, 0)),        # fused bqkv
            ],
            out_specs=[pl.BlockSpec((1, tq, Hp), lambda b, i: (b, i, 0))] * 3,
        ),
        compiler_params=pltpu.CompilerParams(
            dimension_semantics=("parallel", "parallel"),
            vmem_limit_bytes=_vmem_limit(qkv_vmem),
        ),
        cost_estimate=pl.CostEstimate(
            flops=int(2 * B * Np * Ep * 3 * Hp),
            transcendentals=0,
            bytes_accessed=int(xp.size * 2 + wqkv.size * 2 + bqkv.size * 4
                               + 3 * B * Np * Hp * 2),
        ),
    )(xp, wqkv, bqkv)

    # ---- kernel 2: flash attention + fused output projection ----------------
    kernel = functools.partial(_flash_attn_kernel, n_keys=N, masked=(Np != N))
    attn_vmem = (2 * tq * Hp * 2 + 2 * 2 * tkv * Hp * 2
                 + 2 * n_heads * dp * Ep * 2 + 2 * Ep * 4
                 + 2 * tq * Ep * 2
                 + n_heads * tq * dp * 4 + 2 * n_heads * tq * 4
                 + 2 * tq * tkv * 4 + tq * Ep * 4)
    out_padded = pl.pallas_call(
        kernel,
        out_shape=jax.ShapeDtypeStruct((B, Np, Ep), jnp.bfloat16),
        grid_spec=pltpu.PrefetchScalarGridSpec(
            num_scalar_prefetch=0,
            grid=(B, n_qt, n_kvt),
            in_specs=[
                pl.BlockSpec((1, tq, Hp), lambda b, qi, ki: (b, qi, 0)),      # Q tile
                pl.BlockSpec((1, tkv, Hp), lambda b, qi, ki: (b, ki, 0)),     # K tile
                pl.BlockSpec((1, tkv, Hp), lambda b, qi, ki: (b, ki, 0)),     # V tile
                pl.BlockSpec((n_heads, dp, Ep), lambda b, qi, ki: (0, 0, 0)),  # Wp
                pl.BlockSpec((1, Ep), lambda b, qi, ki: (0, 0)),              # bp
            ],
            out_specs=pl.BlockSpec((1, tq, Ep), lambda b, qi, ki: (b, qi, 0)),
            scratch_shapes=[
                pltpu.VMEM((n_heads, tq, 1), jnp.float32),   # running max m
                pltpu.VMEM((n_heads, tq, 1), jnp.float32),   # running sum l
                pltpu.VMEM((n_heads, tq, dp), jnp.float32),  # un-normalized acc
            ],
        ),
        compiler_params=pltpu.CompilerParams(
            dimension_semantics=("parallel", "parallel", "arbitrary"),
            vmem_limit_bytes=_vmem_limit(attn_vmem),
        ),
        cost_estimate=pl.CostEstimate(
            flops=int(4 * B * n_heads * Np * Np * dp + 2 * B * Np * Hp * Ep),
            transcendentals=int(B * n_heads * Np * Np),
            bytes_accessed=int(B * Np * Hp * 2 + 2 * B * n_qt * Np * Hp * 2
                               + wp3.size * 2 + bpp.size * 4 + B * Np * Ep * 2),
        ),
    )(q, k, v, wp3, bpp)

    return out_padded[:, :N, :E].astype(x.dtype)


def reference_forward(x, params, *, n_heads, d_head):
    """Plain-JAX f32 reference mirroring the PyTorch module (eval mode)."""
    wq, bq, wk, bk, wv, bv, wp, bp = params
    B, N, E = x.shape

    def split_heads(t):  # (B, N, H) -> (B, h, N, d)
        return t.reshape(B, N, n_heads, d_head).transpose(0, 2, 1, 3)

    Q = split_heads(x @ wq + bq)
    K = split_heads(x @ wk + bk)
    V = split_heads(x @ wv + bv)
    scores = jnp.einsum("bhqd,bhkd->bhqk", Q, K)
    A = jax.nn.softmax(scores * (d_head ** -0.5), axis=-1)
    out = jnp.einsum("bhal,bhlv->bhav", A, V)
    out = out.transpose(0, 2, 1, 3).reshape(B, N, n_heads * d_head)
    return out @ wp + bp


def init_params(key, *, n_heads, d_head, embedding_size):
    H = n_heads * d_head
    E = embedding_size
    ks = jax.random.split(key, 8)

    # nn.Linear(in, out): weight (out, in); we store transposed (in, out).
    def lin(kw, kb, fan_in, fan_out):
        bound = 1.0 / jnp.sqrt(fan_in)
        w = jax.random.uniform(kw, (fan_in, fan_out), jnp.float32, -bound, bound)
        b = jax.random.uniform(kb, (1, fan_out), jnp.float32, -bound, bound)
        return w, b

    wq, bq = lin(ks[0], ks[1], E, H)
    wk, bk = lin(ks[2], ks[3], E, H)
    wv, bv = lin(ks[4], ks[5], E, H)
    wp, bp = lin(ks[6], ks[7], H, E)
    return (wq, bq, wk, bk, wv, bv, wp, bp)


if __name__ == "__main__":
    n_heads, d_head, embedding_size = 4, 8, 32   # d_hidden = 32
    B, N = 2, 8

    key = jax.random.PRNGKey(0)
    k_x, k_p = jax.random.split(key)
    x = jax.random.normal(k_x, (B, N, embedding_size), jnp.float32)
    params = init_params(k_p, n_heads=n_heads, d_head=d_head,
                         embedding_size=embedding_size)

    out = attention_forward(x, params, n_heads=n_heads, d_head=d_head)
    out = jax.block_until_ready(out)

    ref = reference_forward(x, params, n_heads=n_heads, d_head=d_head)
    assert out.shape == (B, N, embedding_size)
    max_err = jnp.max(jnp.abs(out - ref))
    # bf16 MXU operands + bf16 output + approx reciprocal vs f32 reference.
    assert jnp.allclose(out, ref, atol=5e-2, rtol=5e-2), f"max abs err {max_err}"

    print("KERNEL_OK")
</pallas_src>

<mosaic_0001>
module attributes {stable_mosaic.version = 11 : i64} {
  func.func @_qkv_proj_kernel(%arg0: i32, %arg1: i32, %arg2: memref<1x128x128xbf16, #tpu.memory_space<vmem>>, %arg3: memref<128x1536xbf16, #tpu.memory_space<vmem>>, %arg4: memref<1x1536xf32, #tpu.memory_space<vmem>>, %arg5: memref<1x128x512xbf16, #tpu.memory_space<vmem>>, %arg6: memref<1x128x512xbf16, #tpu.memory_space<vmem>>, %arg7: memref<1x128x512xbf16, #tpu.memory_space<vmem>>) attributes {dimension_semantics = [#tpu.dimension_semantics<parallel>, #tpu.dimension_semantics<parallel>], iteration_bounds = array<i64: 2, 1>, scalar_prefetch = 0 : i64, scratch_operands = 0 : i64, tpu.core_type = #tpu.core_type<tc>, window_params = [{transform_indices = @transform_0, window_bounds = array<i64: 1, 128, 128>}, {pipeline_mode = #tpu.pipeline_mode<synchronous>, transform_indices = @transform_1, window_bounds = array<i64: 128, 1536>}, {pipeline_mode = #tpu.pipeline_mode<synchronous>, transform_indices = @transform_2, window_bounds = array<i64: 1, 1536>}, {transform_indices = @transform_3, window_bounds = array<i64: 1, 128, 512>}, {transform_indices = @transform_4, window_bounds = array<i64: 1, 128, 512>}, {transform_indices = @transform_5, window_bounds = array<i64: 1, 128, 512>}]} {
    %c0 = arith.constant 0 : index
    %c0_0 = arith.constant 0 : index
    %c0_1 = arith.constant 0 : index
    %0 = vector.load %arg2[%c0, %c0_0, %c0_1] : memref<1x128x128xbf16, #tpu.memory_space<vmem>>, vector<1x128x128xbf16>
    %1 = vector.shape_cast %0 : vector<1x128x128xbf16> to vector<128x128xbf16>
    %c0_2 = arith.constant 0 : index
    %c0_3 = arith.constant 0 : index
    %2 = vector.load %arg3[%c0_2, %c0_3] : memref<128x1536xbf16, #tpu.memory_space<vmem>>, vector<128x1536xbf16>
    %cst = arith.constant dense<0.000000e+00> : vector<128x1536xf32>
    %3 = tpu.matmul %1, %2, %cst {dimension_numbers = #tpu.dot_dimension_numbers<[1], [0], [0], [1], [0, 0, 1, 1], [], []>} : vector<128x128xbf16>, vector<128x1536xbf16>, vector<128x1536xf32> -> vector<128x1536xf32>
    %c0_4 = arith.constant 0 : index
    %c0_5 = arith.constant 0 : index
    %4 = vector.load %arg4[%c0_4, %c0_5] : memref<1x1536xf32, #tpu.memory_space<vmem>>, vector<1x1536xf32>
    %5 = vector.broadcast %4 : vector<1x1536xf32> to vector<128x1536xf32>
    %6 = arith.addf %3, %5 : vector<128x1536xf32>
    %7 = vector.extract_strided_slice %6 {offsets = [0, 0], sizes = [128, 512], strides = [1, 1]} : vector<128x1536xf32> to vector<128x512xf32>
    %8 = arith.truncf %7 : vector<128x512xf32> to vector<128x512xbf16>
    %c0_6 = arith.constant 0 : index
    %c0_7 = arith.constant 0 : index
    %c0_8 = arith.constant 0 : index
    %9 = vector.load %arg5[%c0_6, %c0_7, %c0_8] : memref<1x128x512xbf16, #tpu.memory_space<vmem>>, vector<1x128x512xbf16>
    %10 = vector.shape_cast %9 : vector<1x128x512xbf16> to vector<128x512xbf16>
    %11 = vector.shape_cast %8 : vector<128x512xbf16> to vector<1x128x512xbf16>
    tpu.vector_store %arg5[%c0_6, %c0_7, %c0_8], %11 {strides = array<i32>} : memref<1x128x512xbf16, #tpu.memory_space<vmem>>, vector<1x128x512xbf16>,
    %12 = vector.extract_strided_slice %6 {offsets = [0, 512], sizes = [128, 512], strides = [1, 1]} : vector<128x1536xf32> to vector<128x512xf32>
    %13 = arith.truncf %12 : vector<128x512xf32> to vector<128x512xbf16>
    %c0_9 = arith.constant 0 : index
    %c0_10 = arith.constant 0 : index
    %c0_11 = arith.constant 0 : index
    %14 = vector.load %arg6[%c0_9, %c0_10, %c0_11] : memref<1x128x512xbf16, #tpu.memory_space<vmem>>, vector<1x128x512xbf16>
    %15 = vector.shape_cast %14 : vector<1x128x512xbf16> to vector<128x512xbf16>
    %16 = vector.shape_cast %13 : vector<128x512xbf16> to vector<1x128x512xbf16>
    tpu.vector_store %arg6[%c0_9, %c0_10, %c0_11], %16 {strides = array<i32>} : memref<1x128x512xbf16, #tpu.memory_space<vmem>>, vector<1x128x512xbf16>,
    %17 = vector.extract_strided_slice %6 {offsets = [0, 1024], sizes = [128, 512], strides = [1, 1]} : vector<128x1536xf32> to vector<128x512xf32>
    %18 = arith.truncf %17 : vector<128x512xf32> to vector<128x512xbf16>
    %c0_12 = arith.constant 0 : index
    %c0_13 = arith.constant 0 : index
    %c0_14 = arith.constant 0 : index
    %19 = vector.load %arg7[%c0_12, %c0_13, %c0_14] : memref<1x128x512xbf16, #tpu.memory_space<vmem>>, vector<1x128x512xbf16>
    %20 = vector.shape_cast %19 : vector<1x128x512xbf16> to vector<128x512xbf16>
    %21 = vector.shape_cast %18 : vector<128x512xbf16> to vector<1x128x512xbf16>
    tpu.vector_store %arg7[%c0_12, %c0_13, %c0_14], %21 {strides = array<i32>} : memref<1x128x512xbf16, #tpu.memory_space<vmem>>, vector<1x128x512xbf16>,
    return
  }
  func.func @transform_0(%arg0: i32, %arg1: i32) -> (i32, i32, i32) {
    %c0_i32 = arith.constant 0 : i32
    %c0_i32_0 = arith.constant 0 : i32
    return %arg0, %arg1, %c0_i32 : i32, i32, i32
  }
  func.func @transform_1(%arg0: i32, %arg1: i32) -> (i32, i32) {
    %c0_i32 = arith.constant 0 : i32
    %c0_i32_0 = arith.constant 0 : i32
    %c0_i32_1 = arith.constant 0 : i32
    return %c0_i32, %c0_i32_0 : i32, i32
  }
  func.func @transform_2(%arg0: i32, %arg1: i32) -> (i32, i32) {
    %c0_i32 = arith.constant 0 : i32
    %c0_i32_0 = arith.constant 0 : i32
    %c0_i32_1 = arith.constant 0 : i32
    return %c0_i32, %c0_i32_0 : i32, i32
  }
  func.func @transform_3(%arg0: i32, %arg1: i32) -> (i32, i32, i32) {
    %c0_i32 = arith.constant 0 : i32
    %c0_i32_0 = arith.constant 0 : i32
    return %arg0, %arg1, %c0_i32 : i32, i32, i32
  }
  func.func @transform_4(%arg0: i32, %arg1: i32) -> (i32, i32, i32) {
    %c0_i32 = arith.constant 0 : i32
    %c0_i32_0 = arith.constant 0 : i32
    return %arg0, %arg1, %c0_i32 : i32, i32, i32
  }
  func.func @transform_5(%arg0: i32, %arg1: i32) -> (i32, i32, i32) {
    %c0_i32 = arith.constant 0 : i32
    %c0_i32_0 = arith.constant 0 : i32
    return %arg0, %arg1, %c0_i32 : i32, i32, i32
  }
}

</mosaic_0001>

<llo_original>
// kernel: tpu_custom_call.1
$region0: #{tpu_custom_call.1}
  #allocation0 [shape = 'u32[]', space=smem, size = 0x4, offset = 0x4, fixed_abs, tag = 'smem constant byte address 0x4 - core index']
  #allocation1 [shape = 'u32[144,128]{1,0:T(1,128)}', space=vmem, size = 0x12000, scoped, tag = 'internal scratch']
  %s0 = inlined_call_operand.hbm [shape: bf16[2,128,128], index: 0, kind: input, shape index: {}]
  %s1 = inlined_call_operand.hbm [shape: bf16[128,1536], index: 1, kind: input, shape index: {}]
  %s2 = inlined_call_operand.hbm [shape: f32[1,1536], index: 2, kind: input, shape index: {}]
  %s3 = inlined_call_operand.hbm [shape: bf16[2,128,512], index: 3, kind: output, shape index: {0}]
  %s4 = inlined_call_operand.hbm [shape: bf16[2,128,512], index: 4, kind: output, shape index: {1}]
  %s5 = inlined_call_operand.hbm [shape: bf16[2,128,512], index: 5, kind: output, shape index: {2}]
  %6 = xla_tuple %s3, %s4, %s5
  %s7 = sld [smem:[#allocation0]]
  $region73: #{tpu_custom_call.1} parent=0
    _
  %s9 = ssub.s32 1, %s7
  %s10 = scalar_select 0, %s9, %s7
  $region1: #{tpu_custom_call.1} parent=0
    #allocation2 [shape = 'u8[65536]{0}', space=vmem, size = 0x10000, scoped, tag = 'input window, operand 0']
    #allocation3 [shape = 's32[2]{0}', space=sflag, size = 0x8, scoped, tag = 'scoped memory for tpu_custom_call.1']
    #allocation4 [shape = 's32[2]{0}', space=sflag, size = 0x8, scoped, tag = 'scoped memory for tpu_custom_call.1']
    #allocation5 [shape = 'u8[393216]{0}', space=vmem, size = 0x60000, scoped, tag = 'input window, operand 1, single buffered']
    #allocation6 [shape = 's32[1]{0}', space=sflag, size = 0x4, scoped, tag = 'scoped memory for tpu_custom_call.1']
    #allocation7 [shape = 'u8[6144]{0}', space=vmem, size = 0x1800, scoped, tag = 'input window, operand 2, single buffered']
    #allocation8 [shape = 'u8[262144]{0}', space=vmem, size = 0x40000, scoped, tag = 'output window, operand 0']
    #allocation9 [shape = 'u8[262144]{0}', space=vmem, size = 0x40000, scoped, tag = 'output window, operand 1']
    #allocation10 [shape = 's32[2]{0}', space=sflag, size = 0x8, scoped, tag = 'scoped memory for tpu_custom_call.1']
    #allocation11 [shape = 'u8[262144]{0}', space=vmem, size = 0x40000, scoped, tag = 'output window, operand 2']
    %11 = vsyncpa [#allocation3], 0
    %s12 = scalar_lea.sflag [#allocation3], 1
    %13 = vsyncpa %s12, 0
    %14 = vsyncpa [#allocation6], 0
    %15 = vsyncpa [#allocation4], 0
    %s16 = scalar_lea.sflag [#allocation4], 1
    %17 = vsyncpa %s16, 0
    %18 = vsyncpa [#allocation10], 0
    %s19 = scalar_lea.sflag [#allocation10], 1
    %20 = vsyncpa %s19, 0
    loop: start=0, step=1, limit=4
    $region2: #{tpu_custom_call.1} parent=1 // loop_pre_header
      _
    $region3: #{tpu_custom_call.1} parent=1 // loop_header
      %s22 = sphi 0, %s26
      %p23 = scmp.ge.s32.totalorder %s22, 4
      %s29 = sphi 0, %s41
      %s30 = sphi 0, %s37
      %s31 = sphi 0, %s29
      %s32 = sphi 0, %s30
      %s33 = sphi 0, %s31
      %s34 = sphi 0, %s32
      %s46 = sphi 0, %s48
      %s49 = sphi 0, %s46
      %s50 = sphi 0, %s49
      %s66 = sphi 0, %s50
      %s70 = sphi 0, %s70
      %s72 = sphi 0, %s70
      %s73 = sphi 0, %s72
      %s87 = sphi 0, %s73
      %s91 = sphi 0, %s91
      %s93 = sphi 0, %s91
      %s94 = sphi 0, %s93
      %s108 = sphi 0, %s94
      %s116 = sphi 0, %s118
      %s119 = sphi 0, %s116
      %s120 = sphi 0, %s119
      %s136 = sphi 0, %s120
      %s144 = sphi 0, %s146
      %s147 = sphi 0, %s144
      %s148 = sphi 0, %s147
      %s164 = sphi 0, %s148
      %s172 = sphi 0, %s174
      %s175 = sphi 0, %s172
      %s176 = sphi 0, %s175
      %s192 = sphi 0, %s176
    $region4: #{tpu_custom_call.1} parent=1 // loop_header_branch
      %25 = sbr.rel (%p23) target = $region8
    $region5: #{tpu_custom_call.1} parent=1 // loop_body
      %s27 = ssub.s32 %s22, 1
      %s28 = ssub.s32 %s22, 2
      %s35 = sadd.s32 1, %s30
      %p36 = scmp.ge.s32.totalorder %s35, 1
      %s37 = scalar_select %p36, 0, %s35
      %s38 = sadd.s32 1, %s29
      %s39 = scalar_select %p36, %s38, %s29
      %p40 = scmp.ge.s32.totalorder %s39, 2
      %s41 = scalar_select %p40, 0, %s39
      %s42 = ssub.s32 %s29, %s41
      %s43 = ssub.s32 %s30, %s37
      %s44 = sor.u32 %s42, %s43
      %p45 = scmp.eq.s32.totalorder %s44, 0
      %s47 = sadd.s32 %s46, 1
      %s48 = scalar_select %p45, %s46, %s47
      %p51 = pneg %p45
      %p52 = scmp.eq.s32.totalorder %s22, 1
      %p53 = por %p51, %p52
      %p54 = scmp.ne.s32.totalorder %s46, %s49
      %p55 = scmp.eq.s32.totalorder %s22, 0
      %p56 = por %p54, %p55
      %p57 = scmp.ne.s32.totalorder %s46, %s49
      %p58 = scmp.eq.s32.totalorder %s27, 1
      %p59 = por %p57, %p58
      %p60 = scmp.ne.s32.totalorder %s49, %s50
      %p61 = scmp.eq.s32.totalorder %s27, 0
      %p62 = por %p60, %p61
      %p63 = scmp.ne.s32.totalorder %s49, %s50
      %p64 = scmp.eq.s32.totalorder %s28, 1
      %p65 = por %p63, %p64
      %p67 = scmp.ne.s32.totalorder %s50, %s66
      %p68 = scmp.eq.s32.totalorder %s28, 0
      %p69 = por %p67, %p68
      %s71 = sadd.s32 %s70, 1
      %p74 = scmp.eq.s32.totalorder %s22, 1
      %p75 = scmp.ne.s32.totalorder %s70, %s72
      %p76 = scmp.eq.s32.totalorder %s22, 0
      %p77 = por %p75, %p76
      %p78 = scmp.ne.s32.totalorder %s70, %s72
      %p79 = scmp.eq.s32.totalorder %s27, 1
      %p80 = por %p78, %p79
      %p81 = scmp.ne.s32.totalorder %s72, %s73
      %p82 = scmp.eq.s32.totalorder %s27, 0
      %p83 = por %p81, %p82
      %p84 = scmp.ne.s32.totalorder %s72, %s73
      %p85 = scmp.eq.s32.totalorder %s28, 1
      %p86 = por %p84, %p85
      %p88 = scmp.ne.s32.totalorder %s73, %s87
      %p89 = scmp.eq.s32.totalorder %s28, 0
      %p90 = por %p88, %p89
      %s92 = sadd.s32 %s91, 1
      %p95 = scmp.eq.s32.totalorder %s22, 1
      %p96 = scmp.ne.s32.totalorder %s91, %s93
      %p97 = scmp.eq.s32.totalorder %s22, 0
      %p98 = por %p96, %p97
      %p99 = scmp.ne.s32.totalorder %s91, %s93
      %p100 = scmp.eq.s32.totalorder %s27, 1
      %p101 = por %p99, %p100
      %p102 = scmp.ne.s32.totalorder %s93, %s94
      %p103 = scmp.eq.s32.totalorder %s27, 0
      %p104 = por %p102, %p103
      %p105 = scmp.ne.s32.totalorder %s93, %s94
      %p106 = scmp.eq.s32.totalorder %s28, 1
      %p107 = por %p105, %p106
      %p109 = scmp.ne.s32.totalorder %s94, %s108
      %p110 = scmp.eq.s32.totalorder %s28, 0
      %p111 = por %p109, %p110
      %s112 = ssub.s32 %s29, %s41
      %s113 = ssub.s32 %s30, %s37
      %s114 = sor.u32 %s112, %s113
      %p115 = scmp.eq.s32.totalorder %s114, 0
      %s117 = sadd.s32 %s116, 1
      %s118 = scalar_select %p115, %s116, %s117
      %p121 = pneg %p115
      %p122 = scmp.eq.s32.totalorder %s22, 1
      %p123 = por %p121, %p122
      %p124 = scmp.ne.s32.totalorder %s116, %s119
      %p125 = scmp.eq.s32.totalorder %s22, 0
      %p126 = por %p124, %p125
      %p127 = scmp.ne.s32.totalorder %s116, %s119
      %p128 = scmp.eq.s32.totalorder %s27, 1
      %p129 = por %p127, %p128
      %p130 = scmp.ne.s32.totalorder %s119, %s120
      %p131 = scmp.eq.s32.totalorder %s27, 0
      %p132 = por %p130, %p131
      %p133 = scmp.ne.s32.totalorder %s119, %s120
      %p134 = scmp.eq.s32.totalorder %s28, 1
      %p135 = por %p133, %p134
      %p137 = scmp.ne.s32.totalorder %s120, %s136
      %p138 = scmp.eq.s32.totalorder %s28, 0
      %p139 = por %p137, %p138
      %s140 = ssub.s32 %s29, %s41
      %s141 = ssub.s32 %s30, %s37
      %s142 = sor.u32 %s140, %s141
      %p143 = scmp.eq.s32.totalorder %s142, 0
      %s145 = sadd.s32 %s144, 1
      %s146 = scalar_select %p143, %s144, %s145
      %p149 = pneg %p143
      %p150 = scmp.eq.s32.totalorder %s22, 1
      %p151 = por %p149, %p150
      %p152 = scmp.ne.s32.totalorder %s144, %s147
      %p153 = scmp.eq.s32.totalorder %s22, 0
      %p154 = por %p152, %p153
      %p155 = scmp.ne.s32.totalorder %s144, %s147
      %p156 = scmp.eq.s32.totalorder %s27, 1
      %p157 = por %p155, %p156
      %p158 = scmp.ne.s32.totalorder %s147, %s148
      %p159 = scmp.eq.s32.totalorder %s27, 0
      %p160 = por %p158, %p159
      %p161 = scmp.ne.s32.totalorder %s147, %s148
      %p162 = scmp.eq.s32.totalorder %s28, 1
      %p163 = por %p161, %p162
      %p165 = scmp.ne.s32.totalorder %s148, %s164
      %p166 = scmp.eq.s32.totalorder %s28, 0
      %p167 = por %p165, %p166
      %s168 = ssub.s32 %s29, %s41
      %s169 = ssub.s32 %s30, %s37
      %s170 = sor.u32 %s168, %s169
      %p171 = scmp.eq.s32.totalorder %s170, 0
      %s173 = sadd.s32 %s172, 1
      %s174 = scalar_select %p171, %s172, %s173
      %p177 = pneg %p171
      %p178 = scmp.eq.s32.totalorder %s22, 1
      %p179 = por %p177, %p178
      %p180 = scmp.ne.s32.totalorder %s172, %s175
      %p181 = scmp.eq.s32.totalorder %s22, 0
      %p182 = por %p180, %p181
      %p183 = scmp.ne.s32.totalorder %s172, %s175
      %p184 = scmp.eq.s32.totalorder %s27, 1
      %p185 = por %p183, %p184
      %p186 = scmp.ne.s32.totalorder %s175, %s176
      %p187 = scmp.eq.s32.totalorder %s27, 0
      %p188 = por %p186, %p187
      %p189 = scmp.ne.s32.totalorder %s175, %s176
      %p190 = scmp.eq.s32.totalorder %s28, 1
      %p191 = por %p189, %p190
      %p193 = scmp.ne.s32.totalorder %s176, %s192
      %p194 = scmp.eq.s32.totalorder %s28, 0
      %p195 = por %p193, %p194
      %p196 = scmp.le.s32.totalorder 1, %s22
      %p197 = scmp.lt.s32.totalorder %s22, 3
      %p198 = pnand %p196, %p197
      %p199 = pneg %p198
      // Predicated region
      $region9: #{tpu_custom_call.1} parent=5 // pred_check
        _
      $region10: #{tpu_custom_call.1} parent=5 // pred_check_branch
        %201 = sbr.rel (%p198) target = $region12
      $region11: #{tpu_custom_call.1} parent=5 // pred_region
        %s202 = ssub.s32 %s22, 1
        // Predicated region
        $region13: #{tpu_custom_call.1} parent=11 // pred_check
          %p203 = pneg %p83
        $region14: #{tpu_custom_call.1} parent=11 // pred_check_branch
          %205 = sbr.rel (%p203) target = $region16
        $region15: #{tpu_custom_call.1} parent=11 // pred_region
          %s207 = ssub.s32 12288, 12288
          %208 = vsyncadd [#allocation6], %s207
          %s209 = sshll.u32 [#allocation5], 4
          %s210 = int_to_ptr.vmem [resolvable:$true] %s209
          %215 = dma.hbm_to_vmem [thread:$0]  %s1, 12288, %s210, [#allocation6], 768, 768, 48
        $region16: #{tpu_custom_call.1} parent=11 // pred_fallthru
          _
        // Predicated region
        $region17: #{tpu_custom_call.1} parent=11 // pred_check
          %p216 = pneg %p104
        $region18: #{tpu_custom_call.1} parent=11 // pred_check_branch
          %218 = sbr.rel (%p216) target = $region20
        $region19: #{tpu_custom_call.1} parent=11 // pred_region
          %s220 = ssub.s32 192, 192
          %221 = vsyncadd [#allocation6], %s220
          %s223 = sshll.u32 [#allocation7], 4
          %s224 = int_to_ptr.vmem [resolvable:$true] %s223
          %226 = dma.hbm_to_vmem [thread:$0]  %s2, 192, %s224, [#allocation6]
        $region20: #{tpu_custom_call.1} parent=11 // pred_fallthru
          _
      $region12: #{tpu_custom_call.1} parent=5 // pred_fallthru
        _
      %p227 = scmp.lt.s32.totalorder %s22, 2
      // Predicated region
      $region21: #{tpu_custom_call.1} parent=5 // pred_check
        %p228 = pneg %p227
      $region22: #{tpu_custom_call.1} parent=5 // pred_check_branch
        %230 = sbr.rel (%p228) target = $region24
      $region23: #{tpu_custom_call.1} parent=5 // pred_region
        // Predicated region
        $region25: #{tpu_custom_call.1} parent=23 // pred_check
          %p231 = pneg %p56
        $region26: #{tpu_custom_call.1} parent=23 // pred_check_branch
          %233 = sbr.rel (%p231) target = $region28
        $region27: #{tpu_custom_call.1} parent=23 // pred_region
          %s234 = sand.u32 %s46, 1
          %s235 = scalar_lea.sflag [#allocation3], %s234
          %s236 = sand.u32 %s46, 1
          %s237 = smul.addr %s236, 64
          %s238 = scalar_lea.vmem [#allocation2], %s237
          %s239 = smul.u32 16, %s30
          %s241 = ssub.s32 1024, 1024
          %242 = vsyncadd %s235, %s241
          %s243 = smul.addr %s29, 16
          %s244 = sadd.s32 %s239, %s243
          %s245 = smul.addr %s244, 64
          %s246 = scalar_lea.hbm %s0, %s245
          %s247 = sshll.u32 %s238, 4
          %s248 = int_to_ptr.vmem [resolvable:$true] %s247
          %253 = dma.hbm_to_vmem [thread:$0]  %s246, 1024, %s248, %s235, 64, 64, 4
        $region28: #{tpu_custom_call.1} parent=23 // pred_fallthru
          _
      $region24: #{tpu_custom_call.1} parent=5 // pred_fallthru
        _
      %p254 = scmp.le.s32.totalorder 1, %s22
      %p255 = scmp.lt.s32.totalorder %s22, 3
      %p256 = pnand %p254, %p255
      %p257 = pneg %p256
      // Predicated region
      $region29: #{tpu_custom_call.1} parent=5 // pred_check
        _
      $region30: #{tpu_custom_call.1} parent=5 // pred_check_branch
        %259 = sbr.rel (%p256) target = $region32
      $region31: #{tpu_custom_call.1} parent=5 // pred_region
        %s260 = ssub.s32 %s22, 1
        %s261 = sand.u32 %s49, 1
        %s262 = scalar_lea.sflag [#allocation3], %s261
        %s263 = sand.u32 %s49, 1
        %s264 = smul.addr %s263, 64
        %s265 = scalar_lea.vmem [#allocation2], %s264
        // Predicated region
        $region33: #{tpu_custom_call.1} parent=31 // pred_check
          %p266 = pneg %p62
        $region34: #{tpu_custom_call.1} parent=31 // pred_check_branch
          %268 = sbr.rel (%p266) target = $region36
        $region35: #{tpu_custom_call.1} parent=31 // pred_region
          %269 = dma.done %s262, 1024
        $region36: #{tpu_custom_call.1} parent=31 // pred_fallthru
          _
        // Predicated region
        $region37: #{tpu_custom_call.1} parent=31 // pred_check
          %p270 = pneg %p83
        $region38: #{tpu_custom_call.1} parent=31 // pred_check_branch
          %272 = sbr.rel (%p270) target = $region40
        $region39: #{tpu_custom_call.1} parent=31 // pred_region
          %273 = dma.done [#allocation6], 12288
        $region40: #{tpu_custom_call.1} parent=31 // pred_fallthru
          _
        // Predicated region
        $region41: #{tpu_custom_call.1} parent=31 // pred_check
          %p274 = pneg %p104
        $region42: #{tpu_custom_call.1} parent=31 // pred_check_branch
          %276 = sbr.rel (%p274) target = $region44
        $region43: #{tpu_custom_call.1} parent=31 // pred_region
          %277 = dma.done [#allocation6], 192
        $region44: #{tpu_custom_call.1} parent=31 // pred_fallthru
          _
        %s278 = sand.u32 %s49, 1
        %s279 = scalar_lea.sflag [#allocation3], %s278
        %s280 = sand.u32 %s49, 1
        %s281 = smul.addr %s280, 64
        %s282 = scalar_lea.vmem [#allocation2], %s281
        %p283 = pneg %p62
        %p284 = pneg %p59
        %p285 = pneg %p83
        %p286 = pneg %p80
        %p287 = pneg %p104
        %p288 = pneg %p101
        %p289 = pneg %p132
        %p290 = pneg %p129
        %s291 = sand.u32 %s119, 1
        %s292 = scalar_lea.sflag [#allocation4], %s291
        %s293 = sand.u32 %s119, 1
        %s294 = smul.addr %s293, 256
        %s295 = scalar_lea.vmem [#allocation8], %s294
        %p296 = pneg %p160
        %p297 = pneg %p157
        %s298 = sand.u32 %s27, 1
        %s299 = scalar_lea.sflag [#allocation10], %s298
        %s300 = sand.u32 %s147, 1
        %s301 = smul.addr %s300, 256
        %s302 = scalar_lea.vmem [#allocation9], %s301
        %p303 = pneg %p188
        %p304 = pneg %p185
        %s305 = sand.u32 %s27, 1
        %s306 = scalar_lea.sflag [#allocation10], %s305
        %s307 = sand.u32 %s175, 1
        %s308 = smul.addr %s307, 256
        %s309 = scalar_lea.vmem [#allocation11], %s308
        %s310 = smul.u32 16, %s32
        %s311 = smul.u32 16, %s32
        %s312 = smul.u32 16, %s32
        %s313 = smul.u32 16, %s32
        %v315 = vld [vmem:[%s265] sm:$0xf]
        %v316 = vld [vmem:[%s265 + $0x4] sm:$0xf]
        %v317 = vld [vmem:[%s265 + $0x8] sm:$0xf]
        %v318 = vld [vmem:[%s265 + $0xc] sm:$0xf]
        %v319 = vld [vmem:[%s265 + $0x10] sm:$0xf]
        %v320 = vld [vmem:[%s265 + $0x14] sm:$0xf]
        %v321 = vld [vmem:[%s265 + $0x18] sm:$0xf]
        %v322 = vld [vmem:[%s265 + $0x1c] sm:$0xf]
        %v323 = vld [vmem:[%s265 + $0x20] sm:$0xf]
        %v324 = vld [vmem:[%s265 + $0x24] sm:$0xf]
        %v325 = vld [vmem:[%s265 + $0x28] sm:$0xf]
        %v326 = vld [vmem:[%s265 + $0x2c] sm:$0xf]
        %v327 = vld [vmem:[%s265 + $0x30] sm:$0xf]
        %v328 = vld [vmem:[%s265 + $0x34] sm:$0xf]
        %v329 = vld [vmem:[%s265 + $0x38] sm:$0xf]
        %v330 = vld [vmem:[%s265 + $0x3c] sm:$0xf]
        %v331 = vld [vmem:[#allocation5] sm:$0xff]
        %v332 = vld [vmem:[#allocation5 + $0x8] sm:$0xff]
        %v333 = vld [vmem:[#allocation5 + $0x10] sm:$0xff]
        %v334 = vld [vmem:[#allocation5 + $0x18] sm:$0xff]
        %v335 = vld [vmem:[#allocation5 + $0x20] sm:$0xff]
        %v336 = vld [vmem:[#allocation5 + $0x28] sm:$0xff]
        %v337 = vld [vmem:[#allocation5 + $0x30] sm:$0xff]
        %v338 = vld [vmem:[#allocation5 + $0x38] sm:$0xff]
        %v339 = vld [vmem:[#allocation5 + $0x40] sm:$0xff]
        %v340 = vld [vmem:[#allocation5 + $0x48] sm:$0xff]
        %v341 = vld [vmem:[#allocation5 + $0x50] sm:$0xff]
        %v342 = vld [vmem:[#allocation5 + $0x58] sm:$0xff]
        %v343 = vld [vmem:[#allocation5 + $0x60] sm:$0xff]
        %v344 = vld [vmem:[#allocation5 + $0x68] sm:$0xff]
        %v345 = vld [vmem:[#allocation5 + $0x70] sm:$0xff]
        %v346 = vld [vmem:[#allocation5 + $0x78] sm:$0xff]
        %v347 = vld [vmem:[#allocation5 + $0x80] sm:$0xff]
        %v348 = vld [vmem:[#allocation5 + $0x88] sm:$0xff]
        %v349 = vld [vmem:[#allocation5 + $0x90] sm:$0xff]
        %v350 = vld [vmem:[#allocation5 + $0x98] sm:$0xff]
        %v351 = vld [vmem:[#allocation5 + $0xa0] sm:$0xff]
        %v352 = vld [vmem:[#allocation5 + $0xa8] sm:$0xff]
        %v353 = vld [vmem:[#allocation5 + $0xb0] sm:$0xff]
        %v354 = vld [vmem:[#allocation5 + $0xb8] sm:$0xff]
        %v355 = vld [vmem:[#allocation5 + $0xc0] sm:$0xff]
        %v356 = vld [vmem:[#allocation5 + $0xc8] sm:$0xff]
        %v357 = vld [vmem:[#allocation5 + $0xd0] sm:$0xff]
        %v358 = vld [vmem:[#allocation5 + $0xd8] sm:$0xff]
        %v359 = vld [vmem:[#allocation5 + $0xe0] sm:$0xff]
        %v360 = vld [vmem:[#allocation5 + $0xe8] sm:$0xff]
        %v361 = vld [vmem:[#allocation5 + $0xf0] sm:$0xff]
        %v362 = vld [vmem:[#allocation5 + $0xf8] sm:$0xff]
        %v363 = vld [vmem:[#allocation5 + $0x100] sm:$0xff]
        %v364 = vld [vmem:[#allocation5 + $0x108] sm:$0xff]
        %v365 = vld [vmem:[#allocation5 + $0x110] sm:$0xff]
        %v366 = vld [vmem:[#allocation5 + $0x118] sm:$0xff]
        %v367 = vld [vmem:[#allocation5 + $0x120] sm:$0xff]
        %v368 = vld [vmem:[#allocation5 + $0x128] sm:$0xff]
        %v369 = vld [vmem:[#allocation5 + $0x130] sm:$0xff]
        %v370 = vld [vmem:[#allocation5 + $0x138] sm:$0xff]
        %v371 = vld [vmem:[#allocation5 + $0x140] sm:$0xff]
        %v372 = vld [vmem:[#allocation5 + $0x148] sm:$0xff]
        %v373 = vld [vmem:[#allocation5 + $0x150] sm:$0xff]
        %v374 = vld [vmem:[#allocation5 + $0x158] sm:$0xff]
        %v375 = vld [vmem:[#allocation5 + $0x160] sm:$0xff]
        %v376 = vld [vmem:[#allocation5 + $0x168] sm:$0xff]
        %v377 = vld [vmem:[#allocation5 + $0x170] sm:$0xff]
        %v378 = vld [vmem:[#allocation5 + $0x178] sm:$0xff]
        %v379 = vld [vmem:[#allocation5 + $0x180] sm:$0xff]
        %v380 = vld [vmem:[#allocation5 + $0x188] sm:$0xff]
        %v381 = vld [vmem:[#allocation5 + $0x190] sm:$0xff]
        %v382 = vld [vmem:[#allocation5 + $0x198] sm:$0xff]
        %v383 = vld [vmem:[#allocation5 + $0x1a0] sm:$0xff]
        %v384 = vld [vmem:[#allocation5 + $0x1a8] sm:$0xff]
        %v385 = vld [vmem:[#allocation5 + $0x1b0] sm:$0xff]
        %v386 = vld [vmem:[#allocation5 + $0x1b8] sm:$0xff]
        %v387 = vld [vmem:[#allocation5 + $0x1c0] sm:$0xff]
        %v388 = vld [vmem:[#allocation5 + $0x1c8] sm:$0xff]
        %v389 = vld [vmem:[#allocation5 + $0x1d0] sm:$0xff]
        %v390 = vld [vmem:[#allocation5 + $0x1d8] sm:$0xff]
        %v391 = vld [vmem:[#allocation5 + $0x1e0] sm:$0xff]
        %v392 = vld [vmem:[#allocation5 + $0x1e8] sm:$0xff]
        %v393 = vld [vmem:[#allocation5 + $0x1f0] sm:$0xff]
        %v394 = vld [vmem:[#allocation5 + $0x1f8] sm:$0xff]
        %v395 = vld [vmem:[#allocation5 + $0x200] sm:$0xff]
        %v396 = vld [vmem:[#allocation5 + $0x208] sm:$0xff]
        %v397 = vld [vmem:[#allocation5 + $0x210] sm:$0xff]
        %v398 = vld [vmem:[#allocation5 + $0x218] sm:$0xff]
        %v399 = vld [vmem:[#allocation5 + $0x220] sm:$0xff]
        %v400 = vld [vmem:[#allocation5 + $0x228] sm:$0xff]
        %v401 = vld [vmem:[#allocation5 + $0x230] sm:$0xff]
        %v402 = vld [vmem:[#allocation5 + $0x238] sm:$0xff]
        %v403 = vld [vmem:[#allocation5 + $0x240] sm:$0xff]
        %v404 = vld [vmem:[#allocation5 + $0x248] sm:$0xff]
        %v405 = vld [vmem:[#allocation5 + $0x250] sm:$0xff]
        %v406 = vld [vmem:[#allocation5 + $0x258] sm:$0xff]
        %v407 = vld [vmem:[#allocation5 + $0x260] sm:$0xff]
        %v408 = vld [vmem:[#allocation5 + $0x268] sm:$0xff]
        %v409 = vld [vmem:[#allocation5 + $0x270] sm:$0xff]
        %v410 = vld [vmem:[#allocation5 + $0x278] sm:$0xff]
        %v411 = vld [vmem:[#allocation5 + $0x280] sm:$0xff]
        %v412 = vld [vmem:[#allocation5 + $0x288] sm:$0xff]
        %v413 = vld [vmem:[#allocation5 + $0x290] sm:$0xff]
        %v414 = vld [vmem:[#allocation5 + $0x298] sm:$0xff]
        %v415 = vld [vmem:[#allocation5 + $0x2a0] sm:$0xff]
        %v416 = vld [vmem:[#allocation5 + $0x2a8] sm:$0xff]
        %v417 = vld [vmem:[#allocation5 + $0x2b0] sm:$0xff]
        %v418 = vld [vmem:[#allocation5 + $0x2b8] sm:$0xff]
        %v419 = vld [vmem:[#allocation5 + $0x2c0] sm:$0xff]
        %v420 = vld [vmem:[#allocation5 + $0x2c8] sm:$0xff]
        %v421 = vld [vmem:[#allocation5 + $0x2d0] sm:$0xff]
        %v422 = vld [vmem:[#allocation5 + $0x2d8] sm:$0xff]
        %v423 = vld [vmem:[#allocation5 + $0x2e0] sm:$0xff]
        %v424 = vld [vmem:[#allocation5 + $0x2e8] sm:$0xff]
        %v425 = vld [vmem:[#allocation5 + $0x2f0] sm:$0xff]
        %v426 = vld [vmem:[#allocation5 + $0x2f8] sm:$0xff]
        %v427 = vld [vmem:[#allocation7] sm:$0xff]
        %v428 = vld [vmem:[#allocation7 + $0x8] sm:$0xf]
        %v431 = vlaneseq
        %v432 = vshrl.u32 %v431, 7
        %v433 = vsub.s32 0, %v432
        %v434 = vrot.slane %v427, %v433
        %v435 = vlaneseq
        %v436 = vshrl.u32 %v435, 7
        %v437 = vsub.s32 1, %v436
        %v438 = vrot.slane %v427, %v437
        %v439 = vlaneseq
        %v440 = vshrl.u32 %v439, 7
        %v441 = vsub.s32 2, %v440
        %v442 = vrot.slane %v427, %v441
        %v443 = vlaneseq
        %v444 = vshrl.u32 %v443, 7
        %v445 = vsub.s32 3, %v444
        %v446 = vrot.slane %v427, %v445
        %v447 = vlaneseq
        %v448 = vshrl.u32 %v447, 7
        %v449 = vsub.s32 4, %v448
        %v450 = vrot.slane %v427, %v449
        %v451 = vlaneseq
        %v452 = vshrl.u32 %v451, 7
        %v453 = vsub.s32 5, %v452
        %v454 = vrot.slane %v427, %v453
        %v455 = vlaneseq
        %v456 = vshrl.u32 %v455, 7
        %v457 = vsub.s32 6, %v456
        %v458 = vrot.slane %v427, %v457
        %v459 = vlaneseq
        %v460 = vshrl.u32 %v459, 7
        %v461 = vsub.s32 7, %v460
        %v462 = vrot.slane %v427, %v461
        %v463 = vlaneseq
        %v464 = vshrl.u32 %v463, 7
        %v465 = vsub.s32 0, %v464
        %v466 = vrot.slane %v428, %v465
        %v467 = vlaneseq
        %v468 = vshrl.u32 %v467, 7
        %v469 = vsub.s32 1, %v468
        %v470 = vrot.slane %v428, %v469
        %v471 = vlaneseq
        %v472 = vshrl.u32 %v471, 7
        %v473 = vsub.s32 2, %v472
        %v474 = vrot.slane %v428, %v473
        %v475 = vlaneseq
        %v476 = vshrl.u32 %v475, 7
        %v477 = vsub.s32 3, %v476
        %v478 = vrot.slane %v428, %v477
        %v507 = vunpack.c.l.b16 %v315
        %v508 = vunpack.c.l.b16 %v316
        %v509 = vunpack.c.l.b16 %v317
        %v510 = vunpack.c.l.b16 %v318
        %v511 = vunpack.c.l.b16 %v319
        %v512 = vunpack.c.l.b16 %v320
        %v513 = vunpack.c.l.b16 %v321
        %v514 = vunpack.c.l.b16 %v322
        %v515 = vunpack.c.l.b16 %v323
        %v516 = vunpack.c.l.b16 %v324
        %v517 = vunpack.c.l.b16 %v325
        %v518 = vunpack.c.l.b16 %v326
        %v519 = vunpack.c.l.b16 %v327
        %v520 = vunpack.c.l.b16 %v328
        %v521 = vunpack.c.l.b16 %v329
        %v522 = vunpack.c.l.b16 %v330
        %v523 = vpack.c.b16 %v508, %v507
        %v524 = vpack.c.b16 %v510, %v509
        %v525 = vpack.c.b16 %v512, %v511
        %v526 = vpack.c.b16 %v514, %v513
        %v527 = vpack.c.b16 %v516, %v515
        %v528 = vpack.c.b16 %v518, %v517
        %v529 = vpack.c.b16 %v520, %v519
        %v530 = vpack.c.b16 %v522, %v521
        %v635 = vunpack.c.l.b16 %v331
        %v636 = vunpack.c.h.b16 %v331
        %v637 = vunpack.c.l.b16 %v332
        %v638 = vunpack.c.h.b16 %v332
        %v639 = vunpack.c.l.b16 %v333
        %v640 = vunpack.c.h.b16 %v333
        %v641 = vunpack.c.l.b16 %v334
        %v642 = vunpack.c.h.b16 %v334
        %v643 = vunpack.c.l.b16 %v335
        %v644 = vunpack.c.h.b16 %v335
        %v645 = vunpack.c.l.b16 %v336
        %v646 = vunpack.c.h.b16 %v336
        %v647 = vunpack.c.l.b16 %v337
        %v648 = vunpack.c.h.b16 %v337
        %v649 = vunpack.c.l.b16 %v338
        %v650 = vunpack.c.h.b16 %v338
        %v651 = vunpack.c.l.b16 %v339
        %v652 = vunpack.c.h.b16 %v339
        %v653 = vunpack.c.l.b16 %v340
        %v654 = vunpack.c.h.b16 %v340
        %v655 = vunpack.c.l.b16 %v341
        %v656 = vunpack.c.h.b16 %v341
        %v657 = vunpack.c.l.b16 %v342
        %v658 = vunpack.c.h.b16 %v342
        %v659 = vunpack.c.l.b16 %v343
        %v660 = vunpack.c.h.b16 %v343
        %v661 = vunpack.c.l.b16 %v344
        %v662 = vunpack.c.h.b16 %v344
        %v663 = vunpack.c.l.b16 %v345
        %v664 = vunpack.c.h.b16 %v345
        %v665 = vunpack.c.l.b16 %v346
        %v666 = vunpack.c.h.b16 %v346
        %v667 = vunpack.c.l.b16 %v347
        %v668 = vunpack.c.h.b16 %v347
        %v669 = vunpack.c.l.b16 %v348
        %v670 = vunpack.c.h.b16 %v348
        %v671 = vunpack.c.l.b16 %v349
        %v672 = vunpack.c.h.b16 %v349
        %v673 = vunpack.c.l.b16 %v350
        %v674 = vunpack.c.h.b16 %v350
        %v675 = vunpack.c.l.b16 %v351
        %v676 = vunpack.c.h.b16 %v351
        %v677 = vunpack.c.l.b16 %v352
        %v678 = vunpack.c.h.b16 %v352
        %v679 = vunpack.c.l.b16 %v353
        %v680 = vunpack.c.h.b16 %v353
        %v681 = vunpack.c.l.b16 %v354
        %v682 = vunpack.c.h.b16 %v354
        %v683 = vunpack.c.l.b16 %v355
        %v684 = vunpack.c.h.b16 %v355
        %v685 = vunpack.c.l.b16 %v356
        %v686 = vunpack.c.h.b16 %v356
        %v687 = vunpack.c.l.b16 %v357
        %v688 = vunpack.c.h.b16 %v357
        %v689 = vunpack.c.l.b16 %v358
        %v690 = vunpack.c.h.b16 %v358
        %v691 = vunpack.c.l.b16 %v359
        %v692 = vunpack.c.h.b16 %v359
        %v693 = vunpack.c.l.b16 %v360
        %v694 = vunpack.c.h.b16 %v360
        %v695 = vunpack.c.l.b16 %v361
        %v696 = vunpack.c.h.b16 %v361
        %v697 = vunpack.c.l.b16 %v362
        %v698 = vunpack.c.h.b16 %v362
        %v699 = vunpack.c.l.b16 %v363
        %v700 = vunpack.c.h.b16 %v363
        %v701 = vunpack.c.l.b16 %v364
        %v702 = vunpack.c.h.b16 %v364
        %v703 = vunpack.c.l.b16 %v365
        %v704 = vunpack.c.h.b16 %v365
        %v705 = vunpack.c.l.b16 %v366
        %v706 = vunpack.c.h.b16 %v366
        %v707 = vunpack.c.l.b16 %v367
        %v708 = vunpack.c.h.b16 %v367
        %v709 = vunpack.c.l.b16 %v368
        %v710 = vunpack.c.h.b16 %v368
        %v711 = vunpack.c.l.b16 %v369
        %v712 = vunpack.c.h.b16 %v369
        %v713 = vunpack.c.l.b16 %v370
        %v714 = vunpack.c.h.b16 %v370
        %v715 = vunpack.c.l.b16 %v371
        %v716 = vunpack.c.h.b16 %v371
        %v717 = vunpack.c.l.b16 %v372
        %v718 = vunpack.c.h.b16 %v372
        %v719 = vunpack.c.l.b16 %v373
        %v720 = vunpack.c.h.b16 %v373
        %v721 = vunpack.c.l.b16 %v374
        %v722 = vunpack.c.h.b16 %v374
        %v723 = vunpack.c.l.b16 %v375
        %v724 = vunpack.c.h.b16 %v375
        %v725 = vunpack.c.l.b16 %v376
        %v726 = vunpack.c.h.b16 %v376
        %v727 = vunpack.c.l.b16 %v377
        %v728 = vunpack.c.h.b16 %v377
        %v729 = vunpack.c.l.b16 %v378
        %v730 = vunpack.c.h.b16 %v378
        %v731 = vunpack.c.l.b16 %v379
        %v732 = vunpack.c.h.b16 %v379
        %v733 = vunpack.c.l.b16 %v380
        %v734 = vunpack.c.h.b16 %v380
        %v735 = vunpack.c.l.b16 %v381
        %v736 = vunpack.c.h.b16 %v381
        %v737 = vunpack.c.l.b16 %v382
        %v738 = vunpack.c.h.b16 %v382
        %v739 = vunpack.c.l.b16 %v383
        %v740 = vunpack.c.h.b16 %v383
        %v741 = vunpack.c.l.b16 %v384
        %v742 = vunpack.c.h.b16 %v384
        %v743 = vunpack.c.l.b16 %v385
        %v744 = vunpack.c.h.b16 %v385
        %v745 = vunpack.c.l.b16 %v386
        %v746 = vunpack.c.h.b16 %v386
        %v747 = vunpack.c.l.b16 %v387
        %v748 = vunpack.c.h.b16 %v387
        %v749 = vunpack.c.l.b16 %v388
        %v750 = vunpack.c.h.b16 %v388
        %v751 = vunpack.c.l.b16 %v389
        %v752 = vunpack.c.h.b16 %v389
        %v753 = vunpack.c.l.b16 %v390
        %v754 = vunpack.c.h.b16 %v390
        %v755 = vunpack.c.l.b16 %v391
        %v756 = vunpack.c.h.b16 %v391
        %v757 = vunpack.c.l.b16 %v392
        %v758 = vunpack.c.h.b16 %v392
        %v759 = vunpack.c.l.b16 %v393
        %v760 = vunpack.c.h.b16 %v393
        %v761 = vunpack.c.l.b16 %v394
        %v762 = vunpack.c.h.b16 %v394
        %v763 = vunpack.c.l.b16 %v395
        %v764 = vunpack.c.h.b16 %v395
        %v765 = vunpack.c.l.b16 %v396
        %v766 = vunpack.c.h.b16 %v396
        %v767 = vunpack.c.l.b16 %v397
        %v768 = vunpack.c.h.b16 %v397
        %v769 = vunpack.c.l.b16 %v398
        %v770 = vunpack.c.h.b16 %v398
        %v771 = vunpack.c.l.b16 %v399
        %v772 = vunpack.c.h.b16 %v399
        %v773 = vunpack.c.l.b16 %v400
        %v774 = vunpack.c.h.b16 %v400
        %v775 = vunpack.c.l.b16 %v401
        %v776 = vunpack.c.h.b16 %v401
        %v777 = vunpack.c.l.b16 %v402
        %v778 = vunpack.c.h.b16 %v402
        %v779 = vunpack.c.l.b16 %v403
        %v780 = vunpack.c.h.b16 %v403
        %v781 = vunpack.c.l.b16 %v404
        %v782 = vunpack.c.h.b16 %v404
        %v783 = vunpack.c.l.b16 %v405
        %v784 = vunpack.c.h.b16 %v405
        %v785 = vunpack.c.l.b16 %v406
        %v786 = vunpack.c.h.b16 %v406
        %v787 = vunpack.c.l.b16 %v407
        %v788 = vunpack.c.h.b16 %v407
        %v789 = vunpack.c.l.b16 %v408
        %v790 = vunpack.c.h.b16 %v408
        %v791 = vunpack.c.l.b16 %v409
        %v792 = vunpack.c.h.b16 %v409
        %v793 = vunpack.c.l.b16 %v410
        %v794 = vunpack.c.h.b16 %v410
        %v795 = vunpack.c.l.b16 %v411
        %v796 = vunpack.c.h.b16 %v411
        %v797 = vunpack.c.l.b16 %v412
        %v798 = vunpack.c.h.b16 %v412
        %v799 = vunpack.c.l.b16 %v413
        %v800 = vunpack.c.h.b16 %v413
        %v801 = vunpack.c.l.b16 %v414
        %v802 = vunpack.c.h.b16 %v414
        %v803 = vunpack.c.l.b16 %v415
        %v804 = vunpack.c.h.b16 %v415
        %v805 = vunpack.c.l.b16 %v416
        %v806 = vunpack.c.h.b16 %v416
        %v807 = vunpack.c.l.b16 %v417
        %v808 = vunpack.c.h.b16 %v417
        %v809 = vunpack.c.l.b16 %v418
        %v810 = vunpack.c.h.b16 %v418
        %v811 = vunpack.c.l.b16 %v419
        %v812 = vunpack.c.h.b16 %v419
        %v813 = vunpack.c.l.b16 %v420
        %v814 = vunpack.c.h.b16 %v420
        %v815 = vunpack.c.l.b16 %v421
        %v816 = vunpack.c.h.b16 %v421
        %v817 = vunpack.c.l.b16 %v422
        %v818 = vunpack.c.h.b16 %v422
        %v819 = vunpack.c.l.b16 %v423
        %v820 = vunpack.c.h.b16 %v423
        %v821 = vunpack.c.l.b16 %v424
        %v822 = vunpack.c.h.b16 %v424
        %v823 = vunpack.c.l.b16 %v425
        %v824 = vunpack.c.h.b16 %v425
        %v825 = vunpack.c.l.b16 %v426
        %v826 = vunpack.c.h.b16 %v426
        %v827 = vpack.c.b16 %v647, %v635
        %v828 = vpack.c.b16 %v648, %v636
        %v829 = vpack.c.b16 %v649, %v637
        %v830 = vpack.c.b16 %v650, %v638
        %v831 = vpack.c.b16 %v651, %v639
        %v832 = vpack.c.b16 %v652, %v640
        %v833 = vpack.c.b16 %v653, %v641
        %v834 = vpack.c.b16 %v654, %v642
        %v835 = vpack.c.b16 %v655, %v643
        %v836 = vpack.c.b16 %v656, %v644
        %v837 = vpack.c.b16 %v657, %v645
        %v838 = vpack.c.b16 %v658, %v646
        %v839 = vpack.c.b16 %v671, %v659
        %v840 = vpack.c.b16 %v672, %v660
        %v841 = vpack.c.b16 %v673, %v661
        %v842 = vpack.c.b16 %v674, %v662
        %v843 = vpack.c.b16 %v675, %v663
        %v844 = vpack.c.b16 %v676, %v664
        %v845 = vpack.c.b16 %v677, %v665
        %v846 = vpack.c.b16 %v678, %v666
        %v847 = vpack.c.b16 %v679, %v667
        %v848 = vpack.c.b16 %v680, %v668
        %v849 = vpack.c.b16 %v681, %v669
        %v850 = vpack.c.b16 %v682, %v670
        %v851 = vpack.c.b16 %v695, %v683
        %v852 = vpack.c.b16 %v696, %v684
        %v853 = vpack.c.b16 %v697, %v685
        %v854 = vpack.c.b16 %v698, %v686
        %v855 = vpack.c.b16 %v699, %v687
        %v856 = vpack.c.b16 %v700, %v688
        %v857 = vpack.c.b16 %v701, %v689
        %v858 = vpack.c.b16 %v702, %v690
        %v859 = vpack.c.b16 %v703, %v691
        %v860 = vpack.c.b16 %v704, %v692
        %v861 = vpack.c.b16 %v705, %v693
        %v862 = vpack.c.b16 %v706, %v694
        %v863 = vpack.c.b16 %v719, %v707
        %v864 = vpack.c.b16 %v720, %v708
        %v865 = vpack.c.b16 %v721, %v709
        %v866 = vpack.c.b16 %v722, %v710
        %v867 = vpack.c.b16 %v723, %v711
        %v868 = vpack.c.b16 %v724, %v712
        %v869 = vpack.c.b16 %v725, %v713
        %v870 = vpack.c.b16 %v726, %v714
        %v871 = vpack.c.b16 %v727, %v715
        %v872 = vpack.c.b16 %v728, %v716
        %v873 = vpack.c.b16 %v729, %v717
        %v874 = vpack.c.b16 %v730, %v718
        %v875 = vpack.c.b16 %v743, %v731
        %v876 = vpack.c.b16 %v744, %v732
        %v877 = vpack.c.b16 %v745, %v733
        %v878 = vpack.c.b16 %v746, %v734
        %v879 = vpack.c.b16 %v747, %v735
        %v880 = vpack.c.b16 %v748, %v736
        %v881 = vpack.c.b16 %v749, %v737
        %v882 = vpack.c.b16 %v750, %v738
        %v883 = vpack.c.b16 %v751, %v739
        %v884 = vpack.c.b16 %v752, %v740
        %v885 = vpack.c.b16 %v753, %v741
        %v886 = vpack.c.b16 %v754, %v742
        %v887 = vpack.c.b16 %v767, %v755
        %v888 = vpack.c.b16 %v768, %v756
        %v889 = vpack.c.b16 %v769, %v757
        %v890 = vpack.c.b16 %v770, %v758
        %v891 = vpack.c.b16 %v771, %v759
        %v892 = vpack.c.b16 %v772, %v760
        %v893 = vpack.c.b16 %v773, %v761
        %v894 = vpack.c.b16 %v774, %v762
        %v895 = vpack.c.b16 %v775, %v763
        %v896 = vpack.c.b16 %v776, %v764
        %v897 = vpack.c.b16 %v777, %v765
        %v898 = vpack.c.b16 %v778, %v766
        %v899 = vpack.c.b16 %v791, %v779
        %v900 = vpack.c.b16 %v792, %v780
        %v901 = vpack.c.b16 %v793, %v781
        %v902 = vpack.c.b16 %v794, %v782
        %v903 = vpack.c.b16 %v795, %v783
        %v904 = vpack.c.b16 %v796, %v784
        %v905 = vpack.c.b16 %v797, %v785
        %v906 = vpack.c.b16 %v798, %v786
        %v907 = vpack.c.b16 %v799, %v787
        %v908 = vpack.c.b16 %v800, %v788
        %v909 = vpack.c.b16 %v801, %v789
        %v910 = vpack.c.b16 %v802, %v790
        %v911 = vpack.c.b16 %v815, %v803
        %v912 = vpack.c.b16 %v816, %v804
        %v913 = vpack.c.b16 %v817, %v805
        %v914 = vpack.c.b16 %v818, %v806
        %v915 = vpack.c.b16 %v819, %v807
        %v916 = vpack.c.b16 %v820, %v808
        %v917 = vpack.c.b16 %v821, %v809
        %v918 = vpack.c.b16 %v822, %v810
        %v919 = vpack.c.b16 %v823, %v811
        %v920 = vpack.c.b16 %v824, %v812
        %v921 = vpack.c.b16 %v825, %v813
        %v922 = vpack.c.b16 %v826, %v814
        %1019 = vmatprep.subr.bf16.mxu0 %v912
        %1020 = vmatpush1.bf16.msra.mxu0 %v911
        %1021 = vmatprep.subr.bf16.mxu0 %v900
        %1022 = vmatpush1.bf16.msra.mxu0 %v899
        %1023 = vmatprep.subr.bf16.mxu0 %v888
        %1024 = vmatpush1.bf16.msra.mxu0 %v887
        %1025 = vmatprep.subr.bf16.mxu0 %v876
        %1026 = vmatpush1.bf16.msra.mxu0 %v875
        %1027 = vmatprep.subr.bf16.mxu0 %v864
        %1028 = vmatpush1.bf16.msra.mxu0 %v863
        %1029 = vmatprep.subr.bf16.mxu0 %v852
        %1030 = vmatpush1.bf16.msra.mxu0 %v851
        %1031 = vmatprep.subr.bf16.mxu0 %v840
        %1032 = vmatpush1.bf16.msra.mxu0 %v839
        %1033 = vmatprep.subr.bf16.mxu0 %v828
        %1034 = vmatpush1.bf16.msra.mxu0 %v827
        %1035 = vmatprep.subr.bf16.mxu0 0
        %1036 = vmatpush2.bf16.msra.mxu0 0
        %1037 = vmatprep.subr.bf16.mxu0 0
        %1038 = vmatpush2.bf16.msra.mxu0 0
        %1039 = vmatprep.subr.bf16.mxu0 0
        %1040 = vmatpush2.bf16.msra.mxu0 0
        %1041 = vmatprep.subr.bf16.mxu0 0
        %1042 = vmatpush2.bf16.msra.mxu0 0
        %1043 = vmatprep.subr.bf16.mxu0 0
        %1044 = vmatpush2.bf16.msra.mxu0 0
        %1045 = vmatprep.subr.bf16.mxu0 0
        %1046 = vmatpush2.bf16.msra.mxu0 0
        %1047 = vmatprep.subr.bf16.mxu0 0
        %1048 = vmatpush2.bf16.msra.mxu0 0
        %1049 = vmatprep.subr.bf16.mxu0 0
        %1050 = vmatpush2.bf16.msra.mxu0 0
        %1051 = vmatprep.mubr.bf16.mxu0 0
        %1052 = vmatmul.mubr.bf16.gmra.mxu0 %v523
        %v1053 = vpop.f32.mrf.mxu0
        %v1054 = vadd.f32 %v434, %v1053
        %v1055 = vpop.f32.mrf.mxu0
        %v1056 = vadd.f32 %v438, %v1055
        %v1057 = vpop.f32.mrf.mxu0
        %v1058 = vadd.f32 %v434, %v1057
        %v1059 = vpop.f32.mrf.mxu0
        %v1060 = vadd.f32 %v438, %v1059
        %1061 = vmatprep.mubr.bf16.mxu0 0
        %1062 = vmatmul.mubr.bf16.gmra.mxu0 %v524
        %v1063 = vpop.f32.mrf.mxu0
        %v1064 = vadd.f32 %v434, %v1063
        %v1065 = vpop.f32.mrf.mxu0
        %v1066 = vadd.f32 %v438, %v1065
        %v1067 = vpop.f32.mrf.mxu0
        %v1068 = vadd.f32 %v434, %v1067
        %v1069 = vpop.f32.mrf.mxu0
        %v1070 = vadd.f32 %v438, %v1069
        %1071 = vmatprep.mubr.bf16.mxu0 0
        %1072 = vmatmul.mubr.bf16.gmra.mxu0 %v525
        %v1073 = vpop.f32.mrf.mxu0
        %v1074 = vadd.f32 %v434, %v1073
        %v1075 = vpop.f32.mrf.mxu0
        %v1076 = vadd.f32 %v438, %v1075
        %v1077 = vpop.f32.mrf.mxu0
        %v1078 = vadd.f32 %v434, %v1077
        %v1079 = vpop.f32.mrf.mxu0
        %v1080 = vadd.f32 %v438, %v1079
        %1081 = vmatprep.mubr.bf16.mxu0 0
        %1082 = vmatmul.mubr.bf16.gmra.mxu0 %v526
        %v1083 = vpop.f32.mrf.mxu0
        %v1084 = vadd.f32 %v434, %v1083
        %v1085 = vpop.f32.mrf.mxu0
        %v1086 = vadd.f32 %v438, %v1085
        %v1087 = vpop.f32.mrf.mxu0
        %v1088 = vadd.f32 %v434, %v1087
        %v1089 = vpop.f32.mrf.mxu0
        %v1090 = vadd.f32 %v438, %v1089
        %1091 = vmatprep.mubr.bf16.mxu0 0
        %1092 = vmatmul.mubr.bf16.gmra.mxu0 %v527
        %v1093 = vpop.f32.mrf.mxu0
        %v1094 = vadd.f32 %v434, %v1093
        %v1095 = vpop.f32.mrf.mxu0
        %v1096 = vadd.f32 %v438, %v1095
        %v1097 = vpop.f32.mrf.mxu0
        %v1098 = vadd.f32 %v434, %v1097
        %v1099 = vpop.f32.mrf.mxu0
        %v1100 = vadd.f32 %v438, %v1099
        %1101 = vmatprep.mubr.bf16.mxu0 0
        %1102 = vmatmul.mubr.bf16.gmra.mxu0 %v528
        %v1103 = vpop.f32.mrf.mxu0
        %v1104 = vadd.f32 %v434, %v1103
        %v1105 = vpop.f32.mrf.mxu0
        %v1106 = vadd.f32 %v438, %v1105
        %v1107 = vpop.f32.mrf.mxu0
        %v1108 = vadd.f32 %v434, %v1107
        %v1109 = vpop.f32.mrf.mxu0
        %v1110 = vadd.f32 %v438, %v1109
        %1111 = vmatprep.mubr.bf16.mxu0 0
        %1112 = vmatmul.mubr.bf16.gmra.mxu0 %v529
        %v1113 = vpop.f32.mrf.mxu0
        %v1114 = vadd.f32 %v434, %v1113
        %v1115 = vpop.f32.mrf.mxu0
        %v1116 = vadd.f32 %v438, %v1115
        %v1117 = vpop.f32.mrf.mxu0
        %v1118 = vadd.f32 %v434, %v1117
        %v1119 = vpop.f32.mrf.mxu0
        %v1120 = vadd.f32 %v438, %v1119
        %1121 = vmatprep.mubr.bf16.mxu0 0
        %1122 = vmatmul.mubr.bf16.gmra.mxu0 %v530
        %v1123 = vpop.f32.mrf.mxu0
        %v1124 = vadd.f32 %v434, %v1123
        %v1125 = vpop.f32.mrf.mxu0
        %v1126 = vadd.f32 %v438, %v1125
        %v1127 = vpop.f32.mrf.mxu0
        %v1128 = vadd.f32 %v434, %v1127
        %v1129 = vpop.f32.mrf.mxu0
        %v1130 = vadd.f32 %v438, %v1129
        %1131 = vdwg.mxu0
        %1132 = vmatprep.subr.bf16.mxu0 %v914
        %1133 = vmatpush1.bf16.msra.mxu0 %v913
        %1134 = vmatprep.subr.bf16.mxu0 %v902
        %1135 = vmatpush1.bf16.msra.mxu0 %v901
        %1136 = vmatprep.subr.bf16.mxu0 %v890
        %1137 = vmatpush1.bf16.msra.mxu0 %v889
        %1138 = vmatprep.subr.bf16.mxu0 %v878
        %1139 = vmatpush1.bf16.msra.mxu0 %v877
        %1140 = vmatprep.subr.bf16.mxu0 %v866
        %1141 = vmatpush1.bf16.msra.mxu0 %v865
        %1142 = vmatprep.subr.bf16.mxu0 %v854
        %1143 = vmatpush1.bf16.msra.mxu0 %v853
        %1144 = vmatprep.subr.bf16.mxu0 %v842
        %1145 = vmatpush1.bf16.msra.mxu0 %v841
        %1146 = vmatprep.subr.bf16.mxu0 %v830
        %1147 = vmatpush1.bf16.msra.mxu0 %v829
        %1148 = vmatprep.subr.bf16.mxu0 0
        %1149 = vmatpush2.bf16.msra.mxu0 0
        %1150 = vmatprep.subr.bf16.mxu0 0
        %1151 = vmatpush2.bf16.msra.mxu0 0
        %1152 = vmatprep.subr.bf16.mxu0 0
        %1153 = vmatpush2.bf16.msra.mxu0 0
        %1154 = vmatprep.subr.bf16.mxu0 0
        %1155 = vmatpush2.bf16.msra.mxu0 0
        %1156 = vmatprep.subr.bf16.mxu0 0
        %1157 = vmatpush2.bf16.msra.mxu0 0
        %1158 = vmatprep.subr.bf16.mxu0 0
        %1159 = vmatpush2.bf16.msra.mxu0 0
        %1160 = vmatprep.subr.bf16.mxu0 0
        %1161 = vmatpush2.bf16.msra.mxu0 0
        %1162 = vmatprep.subr.bf16.mxu0 0
        %1163 = vmatpush2.bf16.msra.mxu0 0
        %1164 = vmatprep.mubr.bf16.mxu0 0
        %1165 = vmatmul.mubr.bf16.gmra.mxu0 %v523
        %v1166 = vpop.f32.mrf.mxu0
        %v1167 = vadd.f32 %v442, %v1166
        %v1168 = vpop.f32.mrf.mxu0
        %v1169 = vadd.f32 %v446, %v1168
        %v1170 = vpop.f32.mrf.mxu0
        %v1171 = vadd.f32 %v442, %v1170
        %v1172 = vpop.f32.mrf.mxu0
        %v1173 = vadd.f32 %v446, %v1172
        %1174 = vmatprep.mubr.bf16.mxu0 0
        %1175 = vmatmul.mubr.bf16.gmra.mxu0 %v524
        %v1176 = vpop.f32.mrf.mxu0
        %v1177 = vadd.f32 %v442, %v1176
        %v1178 = vpop.f32.mrf.mxu0
        %v1179 = vadd.f32 %v446, %v1178
        %v1180 = vpop.f32.mrf.mxu0
        %v1181 = vadd.f32 %v442, %v1180
        %v1182 = vpop.f32.mrf.mxu0
        %v1183 = vadd.f32 %v446, %v1182
        %1184 = vmatprep.mubr.bf16.mxu0 0
        %1185 = vmatmul.mubr.bf16.gmra.mxu0 %v525
        %v1186 = vpop.f32.mrf.mxu0
        %v1187 = vadd.f32 %v442, %v1186
        %v1188 = vpop.f32.mrf.mxu0
        %v1189 = vadd.f32 %v446, %v1188
        %v1190 = vpop.f32.mrf.mxu0
        %v1191 = vadd.f32 %v442, %v1190
        %v1192 = vpop.f32.mrf.mxu0
        %v1193 = vadd.f32 %v446, %v1192
        %1194 = vmatprep.mubr.bf16.mxu0 0
        %1195 = vmatmul.mubr.bf16.gmra.mxu0 %v526
        %v1196 = vpop.f32.mrf.mxu0
        %v1197 = vadd.f32 %v442, %v1196
        %v1198 = vpop.f32.mrf.mxu0
        %v1199 = vadd.f32 %v446, %v1198
        %v1200 = vpop.f32.mrf.mxu0
        %v1201 = vadd.f32 %v442, %v1200
        %v1202 = vpop.f32.mrf.mxu0
        %v1203 = vadd.f32 %v446, %v1202
        %1204 = vmatprep.mubr.bf16.mxu0 0
        %1205 = vmatmul.mubr.bf16.gmra.mxu0 %v527
        %v1206 = vpop.f32.mrf.mxu0
        %v1207 = vadd.f32 %v442, %v1206
        %v1208 = vpop.f32.mrf.mxu0
        %v1209 = vadd.f32 %v446, %v1208
        %v1210 = vpop.f32.mrf.mxu0
        %v1211 = vadd.f32 %v442, %v1210
        %v1212 = vpop.f32.mrf.mxu0
        %v1213 = vadd.f32 %v446, %v1212
        %1214 = vmatprep.mubr.bf16.mxu0 0
        %1215 = vmatmul.mubr.bf16.gmra.mxu0 %v528
        %v1216 = vpop.f32.mrf.mxu0
        %v1217 = vadd.f32 %v442, %v1216
        %v1218 = vpop.f32.mrf.mxu0
        %v1219 = vadd.f32 %v446, %v1218
        %v1220 = vpop.f32.mrf.mxu0
        %v1221 = vadd.f32 %v442, %v1220
        %v1222 = vpop.f32.mrf.mxu0
        %v1223 = vadd.f32 %v446, %v1222
        %1224 = vmatprep.mubr.bf16.mxu0 0
        %1225 = vmatmul.mubr.bf16.gmra.mxu0 %v529
        %v1226 = vpop.f32.mrf.mxu0
        %v1227 = vadd.f32 %v442, %v1226
        %v1228 = vpop.f32.mrf.mxu0
        %v1229 = vadd.f32 %v446, %v1228
        %v1230 = vpop.f32.mrf.mxu0
        %v1231 = vadd.f32 %v442, %v1230
        %v1232 = vpop.f32.mrf.mxu0
        %v1233 = vadd.f32 %v446, %v1232
        %1234 = vmatprep.mubr.bf16.mxu0 0
        %1235 = vmatmul.mubr.bf16.gmra.mxu0 %v530
        %v1236 = vpop.f32.mrf.mxu0
        %v1237 = vadd.f32 %v442, %v1236
        %v1238 = vpop.f32.mrf.mxu0
        %v1239 = vadd.f32 %v446, %v1238
        %v1240 = vpop.f32.mrf.mxu0
        %v1241 = vadd.f32 %v442, %v1240
        %v1242 = vpop.f32.mrf.mxu0
        %v1243 = vadd.f32 %v446, %v1242
        %1244 = vdwg.mxu0
        %1245 = vmatprep.subr.bf16.mxu0 %v916
        %1246 = vmatpush1.bf16.msra.mxu0 %v915
        %1247 = vmatprep.subr.bf16.mxu0 %v904
        %1248 = vmatpush1.bf16.msra.mxu0 %v903
        %1249 = vmatprep.subr.bf16.mxu0 %v892
        %1250 = vmatpush1.bf16.msra.mxu0 %v891
        %1251 = vmatprep.subr.bf16.mxu0 %v880
        %1252 = vmatpush1.bf16.msra.mxu0 %v879
        %1253 = vmatprep.subr.bf16.mxu0 %v868
        %1254 = vmatpush1.bf16.msra.mxu0 %v867
        %1255 = vmatprep.subr.bf16.mxu0 %v856
        %1256 = vmatpush1.bf16.msra.mxu0 %v855
        %1257 = vmatprep.subr.bf16.mxu0 %v844
        %1258 = vmatpush1.bf16.msra.mxu0 %v843
        %1259 = vmatprep.subr.bf16.mxu0 %v832
        %1260 = vmatpush1.bf16.msra.mxu0 %v831
        %1261 = vmatprep.subr.bf16.mxu0 0
        %1262 = vmatpush2.bf16.msra.mxu0 0
        %1263 = vmatprep.subr.bf16.mxu0 0
        %1264 = vmatpush2.bf16.msra.mxu0 0
        %1265 = vmatprep.subr.bf16.mxu0 0
        %1266 = vmatpush2.bf16.msra.mxu0 0
        %1267 = vmatprep.subr.bf16.mxu0 0
        %1268 = vmatpush2.bf16.msra.mxu0 0
        %1269 = vmatprep.subr.bf16.mxu0 0
        %1270 = vmatpush2.bf16.msra.mxu0 0
        %1271 = vmatprep.subr.bf16.mxu0 0
        %1272 = vmatpush2.bf16.msra.mxu0 0
        %1273 = vmatprep.subr.bf16.mxu0 0
        %1274 = vmatpush2.bf16.msra.mxu0 0
        %1275 = vmatprep.subr.bf16.mxu0 0
        %1276 = vmatpush2.bf16.msra.mxu0 0
        %1277 = vmatprep.mubr.bf16.mxu0 0
        %1278 = vmatmul.mubr.bf16.gmra.mxu0 %v523
        %v1279 = vpop.f32.mrf.mxu0
        %v1280 = vadd.f32 %v450, %v1279
        %v1281 = vpop.f32.mrf.mxu0
        %v1282 = vadd.f32 %v454, %v1281
        %v1283 = vpop.f32.mrf.mxu0
        %v1284 = vadd.f32 %v450, %v1283
        %v1285 = vpop.f32.mrf.mxu0
        %v1286 = vadd.f32 %v454, %v1285
        %1287 = vmatprep.mubr.bf16.mxu0 0
        %1288 = vmatmul.mubr.bf16.gmra.mxu0 %v524
        %v1289 = vpop.f32.mrf.mxu0
        %v1290 = vadd.f32 %v450, %v1289
        %v1291 = vpop.f32.mrf.mxu0
        %v1292 = vadd.f32 %v454, %v1291
        %v1293 = vpop.f32.mrf.mxu0
        %v1294 = vadd.f32 %v450, %v1293
        %v1295 = vpop.f32.mrf.mxu0
        %v1296 = vadd.f32 %v454, %v1295
        %1297 = vmatprep.mubr.bf16.mxu0 0
        %1298 = vmatmul.mubr.bf16.gmra.mxu0 %v525
        %v1299 = vpop.f32.mrf.mxu0
        %v1300 = vadd.f32 %v450, %v1299
        %v1301 = vpop.f32.mrf.mxu0
        %v1302 = vadd.f32 %v454, %v1301
        %v1303 = vpop.f32.mrf.mxu0
        %v1304 = vadd.f32 %v450, %v1303
        %v1305 = vpop.f32.mrf.mxu0
        %v1306 = vadd.f32 %v454, %v1305
        %1307 = vmatprep.mubr.bf16.mxu0 0
        %1308 = vmatmul.mubr.bf16.gmra.mxu0 %v526
        %v1309 = vpop.f32.mrf.mxu0
        %v1310 = vadd.f32 %v450, %v1309
        %v1311 = vpop.f32.mrf.mxu0
        %v1312 = vadd.f32 %v454, %v1311
        %v1313 = vpop.f32.mrf.mxu0
        %v1314 = vadd.f32 %v450, %v1313
        %v1315 = vpop.f32.mrf.mxu0
        %v1316 = vadd.f32 %v454, %v1315
        %1317 = vmatprep.mubr.bf16.mxu0 0
        %1318 = vmatmul.mubr.bf16.gmra.mxu0 %v527
        %v1319 = vpop.f32.mrf.mxu0
        %v1320 = vadd.f32 %v450, %v1319
        %v1321 = vpop.f32.mrf.mxu0
        %v1322 = vadd.f32 %v454, %v1321
        %v1323 = vpop.f32.mrf.mxu0
        %v1324 = vadd.f32 %v450, %v1323
        %v1325 = vpop.f32.mrf.mxu0
        %v1326 = vadd.f32 %v454, %v1325
        %1327 = vmatprep.mubr.bf16.mxu0 0
        %1328 = vmatmul.mubr.bf16.gmra.mxu0 %v528
        %v1329 = vpop.f32.mrf.mxu0
        %v1330 = vadd.f32 %v450, %v1329
        %v1331 = vpop.f32.mrf.mxu0
        %v1332 = vadd.f32 %v454, %v1331
        %v1333 = vpop.f32.mrf.mxu0
        %v1334 = vadd.f32 %v450, %v1333
        %v1335 = vpop.f32.mrf.mxu0
        %v1336 = vadd.f32 %v454, %v1335
        %1337 = vmatprep.mubr.bf16.mxu0 0
        %1338 = vmatmul.mubr.bf16.gmra.mxu0 %v529
        %v1339 = vpop.f32.mrf.mxu0
        %v1340 = vadd.f32 %v450, %v1339
        %v1341 = vpop.f32.mrf.mxu0
        %v1342 = vadd.f32 %v454, %v1341
        %v1343 = vpop.f32.mrf.mxu0
        %v1344 = vadd.f32 %v450, %v1343
        %v1345 = vpop.f32.mrf.mxu0
        %v1346 = vadd.f32 %v454, %v1345
        %1347 = vmatprep.mubr.bf16.mxu0 0
        %1348 = vmatmul.mubr.bf16.gmra.mxu0 %v530
        %v1349 = vpop.f32.mrf.mxu0
        %v1350 = vadd.f32 %v450, %v1349
        %v1351 = vpop.f32.mrf.mxu0
        %v1352 = vadd.f32 %v454, %v1351
        %v1353 = vpop.f32.mrf.mxu0
        %v1354 = vadd.f32 %v450, %v1353
        %v1355 = vpop.f32.mrf.mxu0
        %v1356 = vadd.f32 %v454, %v1355
        %1357 = vdwg.mxu0
        %1358 = vmatprep.subr.bf16.mxu0 %v918
        %1359 = vmatpush1.bf16.msra.mxu0 %v917
        %1360 = vmatprep.subr.bf16.mxu0 %v906
        %1361 = vmatpush1.bf16.msra.mxu0 %v905
        %1362 = vmatprep.subr.bf16.mxu0 %v894
        %1363 = vmatpush1.bf16.msra.mxu0 %v893
        %1364 = vmatprep.subr.bf16.mxu0 %v882
        %1365 = vmatpush1.bf16.msra.mxu0 %v881
        %1366 = vmatprep.subr.bf16.mxu0 %v870
        %1367 = vmatpush1.bf16.msra.mxu0 %v869
        %1368 = vmatprep.subr.bf16.mxu0 %v858
        %1369 = vmatpush1.bf16.msra.mxu0 %v857
        %1370 = vmatprep.subr.bf16.mxu0 %v846
        %1371 = vmatpush1.bf16.msra.mxu0 %v845
        %1372 = vmatprep.subr.bf16.mxu0 %v834
        %1373 = vmatpush1.bf16.msra.mxu0 %v833
        %1374 = vmatprep.subr.bf16.mxu0 0
        %1375 = vmatpush2.bf16.msra.mxu0 0
        %1376 = vmatprep.subr.bf16.mxu0 0
        %1377 = vmatpush2.bf16.msra.mxu0 0
        %1378 = vmatprep.subr.bf16.mxu0 0
        %1379 = vmatpush2.bf16.msra.mxu0 0
        %1380 = vmatprep.subr.bf16.mxu0 0
        %1381 = vmatpush2.bf16.msra.mxu0 0
        %1382 = vmatprep.subr.bf16.mxu0 0
        %1383 = vmatpush2.bf16.msra.mxu0 0
        %1384 = vmatprep.subr.bf16.mxu0 0
        %1385 = vmatpush2.bf16.msra.mxu0 0
        %1386 = vmatprep.subr.bf16.mxu0 0
        %1387 = vmatpush2.bf16.msra.mxu0 0
        %1388 = vmatprep.subr.bf16.mxu0 0
        %1389 = vmatpush2.bf16.msra.mxu0 0
        %1390 = vmatprep.mubr.bf16.mxu0 0
        %1391 = vmatmul.mubr.bf16.gmra.mxu0 %v523
        %v1392 = vpop.f32.mrf.mxu0
        %v1393 = vadd.f32 %v458, %v1392
        %v1394 = vpop.f32.mrf.mxu0
        %v1395 = vadd.f32 %v462, %v1394
        %v1396 = vpop.f32.mrf.mxu0
        %v1397 = vadd.f32 %v458, %v1396
        %v1398 = vpop.f32.mrf.mxu0
        %v1399 = vadd.f32 %v462, %v1398
        %1400 = vmatprep.mubr.bf16.mxu0 0
        %1401 = vmatmul.mubr.bf16.gmra.mxu0 %v524
        %v1402 = vpop.f32.mrf.mxu0
        %v1403 = vadd.f32 %v458, %v1402
        %v1404 = vpop.f32.mrf.mxu0
        %v1405 = vadd.f32 %v462, %v1404
        %v1406 = vpop.f32.mrf.mxu0
        %v1407 = vadd.f32 %v458, %v1406
        %v1408 = vpop.f32.mrf.mxu0
        %v1409 = vadd.f32 %v462, %v1408
        %1410 = vmatprep.mubr.bf16.mxu0 0
        %1411 = vmatmul.mubr.bf16.gmra.mxu0 %v525
        %v1412 = vpop.f32.mrf.mxu0
        %v1413 = vadd.f32 %v458, %v1412
        %v1414 = vpop.f32.mrf.mxu0
        %v1415 = vadd.f32 %v462, %v1414
        %v1416 = vpop.f32.mrf.mxu0
        %v1417 = vadd.f32 %v458, %v1416
        %v1418 = vpop.f32.mrf.mxu0
        %v1419 = vadd.f32 %v462, %v1418
        %1420 = vmatprep.mubr.bf16.mxu0 0
        %1421 = vmatmul.mubr.bf16.gmra.mxu0 %v526
        %v1422 = vpop.f32.mrf.mxu0
        %v1423 = vadd.f32 %v458, %v1422
        %v1424 = vpop.f32.mrf.mxu0
        %v1425 = vadd.f32 %v462, %v1424
        %v1426 = vpop.f32.mrf.mxu0
        %v1427 = vadd.f32 %v458, %v1426
        %v1428 = vpop.f32.mrf.mxu0
        %v1429 = vadd.f32 %v462, %v1428
        %1430 = vmatprep.mubr.bf16.mxu0 0
        %1431 = vmatmul.mubr.bf16.gmra.mxu0 %v527
        %v1432 = vpop.f32.mrf.mxu0
        %v1433 = vadd.f32 %v458, %v1432
        %v1434 = vpop.f32.mrf.mxu0
        %v1435 = vadd.f32 %v462, %v1434
        %v1436 = vpop.f32.mrf.mxu0
        %v1437 = vadd.f32 %v458, %v1436
        %v1438 = vpop.f32.mrf.mxu0
        %v1439 = vadd.f32 %v462, %v1438
        %1440 = vmatprep.mubr.bf16.mxu0 0
        %1441 = vmatmul.mubr.bf16.gmra.mxu0 %v528
        %v1442 = vpop.f32.mrf.mxu0
        %v1443 = vadd.f32 %v458, %v1442
        %v1444 = vpop.f32.mrf.mxu0
        %v1445 = vadd.f32 %v462, %v1444
        %v1446 = vpop.f32.mrf.mxu0
        %v1447 = vadd.f32 %v458, %v1446
        %v1448 = vpop.f32.mrf.mxu0
        %v1449 = vadd.f32 %v462, %v1448
        %1450 = vmatprep.mubr.bf16.mxu0 0
        %1451 = vmatmul.mubr.bf16.gmra.mxu0 %v529
        %v1452 = vpop.f32.mrf.mxu0
        %v1453 = vadd.f32 %v458, %v1452
        %v1454 = vpop.f32.mrf.mxu0
        %v1455 = vadd.f32 %v462, %v1454
        %v1456 = vpop.f32.mrf.mxu0
        %v1457 = vadd.f32 %v458, %v1456
        %v1458 = vpop.f32.mrf.mxu0
        %v1459 = vadd.f32 %v462, %v1458
        %1460 = vmatprep.mubr.bf16.mxu0 0
        %1461 = vmatmul.mubr.bf16.gmra.mxu0 %v530
        %v1462 = vpop.f32.mrf.mxu0
        %v1463 = vadd.f32 %v458, %v1462
        %v1464 = vpop.f32.mrf.mxu0
        %v1465 = vadd.f32 %v462, %v1464
        %v1466 = vpop.f32.mrf.mxu0
        %v1467 = vadd.f32 %v458, %v1466
        %v1468 = vpop.f32.mrf.mxu0
        %v1469 = vadd.f32 %v462, %v1468
        %1470 = vdwg.mxu0
        %1471 = vmatprep.subr.bf16.mxu0 %v920
        %1472 = vmatpush1.bf16.msra.mxu0 %v919
        %1473 = vmatprep.subr.bf16.mxu0 %v908
        %1474 = vmatpush1.bf16.msra.mxu0 %v907
        %1475 = vmatprep.subr.bf16.mxu0 %v896
        %1476 = vmatpush1.bf16.msra.mxu0 %v895
        %1477 = vmatprep.subr.bf16.mxu0 %v884
        %1478 = vmatpush1.bf16.msra.mxu0 %v883
        %1479 = vmatprep.subr.bf16.mxu0 %v872
        %1480 = vmatpush1.bf16.msra.mxu0 %v871
        %1481 = vmatprep.subr.bf16.mxu0 %v860
        %1482 = vmatpush1.bf16.msra.mxu0 %v859
        %1483 = vmatprep.subr.bf16.mxu0 %v848
        %1484 = vmatpush1.bf16.msra.mxu0 %v847
        %1485 = vmatprep.subr.bf16.mxu0 %v836
        %1486 = vmatpush1.bf16.msra.mxu0 %v835
        %1487 = vmatprep.subr.bf16.mxu0 0
        %1488 = vmatpush2.bf16.msra.mxu0 0
        %1489 = vmatprep.subr.bf16.mxu0 0
        %1490 = vmatpush2.bf16.msra.mxu0 0
        %1491 = vmatprep.subr.bf16.mxu0 0
        %1492 = vmatpush2.bf16.msra.mxu0 0
        %1493 = vmatprep.subr.bf16.mxu0 0
        %1494 = vmatpush2.bf16.msra.mxu0 0
        %1495 = vmatprep.subr.bf16.mxu0 0
        %1496 = vmatpush2.bf16.msra.mxu0 0
        %1497 = vmatprep.subr.bf16.mxu0 0
        %1498 = vmatpush2.bf16.msra.mxu0 0
        %1499 = vmatprep.subr.bf16.mxu0 0
        %1500 = vmatpush2.bf16.msra.mxu0 0
        %1501 = vmatprep.subr.bf16.mxu0 0
        %1502 = vmatpush2.bf16.msra.mxu0 0
        %1503 = vmatprep.mubr.bf16.mxu0 0
        %1504 = vmatmul.mubr.bf16.gmra.mxu0 %v523
        %v1505 = vpop.f32.mrf.mxu0
        %v1506 = vadd.f32 %v466, %v1505
        %v1507 = vpop.f32.mrf.mxu0
        %v1508 = vadd.f32 %v470, %v1507
        %v1509 = vpop.f32.mrf.mxu0
        %v1510 = vadd.f32 %v466, %v1509
        %v1511 = vpop.f32.mrf.mxu0
        %v1512 = vadd.f32 %v470, %v1511
        %1513 = vmatprep.mubr.bf16.mxu0 0
        %1514 = vmatmul.mubr.bf16.gmra.mxu0 %v524
        %v1515 = vpop.f32.mrf.mxu0
        %v1516 = vadd.f32 %v466, %v1515
        %v1517 = vpop.f32.mrf.mxu0
        %v1518 = vadd.f32 %v470, %v1517
        %v1519 = vpop.f32.mrf.mxu0
        %v1520 = vadd.f32 %v466, %v1519
        %v1521 = vpop.f32.mrf.mxu0
        %v1522 = vadd.f32 %v470, %v1521
        %1523 = vmatprep.mubr.bf16.mxu0 0
        %1524 = vmatmul.mubr.bf16.gmra.mxu0 %v525
        %v1525 = vpop.f32.mrf.mxu0
        %v1526 = vadd.f32 %v466, %v1525
        %v1527 = vpop.f32.mrf.mxu0
        %v1528 = vadd.f32 %v470, %v1527
        %v1529 = vpop.f32.mrf.mxu0
        %v1530 = vadd.f32 %v466, %v1529
        %v1531 = vpop.f32.mrf.mxu0
        %v1532 = vadd.f32 %v470, %v1531
        %1533 = vmatprep.mubr.bf16.mxu0 0
        %1534 = vmatmul.mubr.bf16.gmra.mxu0 %v526
        %v1535 = vpop.f32.mrf.mxu0
        %v1536 = vadd.f32 %v466, %v1535
        %v1537 = vpop.f32.mrf.mxu0
        %v1538 = vadd.f32 %v470, %v1537
        %v1539 = vpop.f32.mrf.mxu0
        %v1540 = vadd.f32 %v466, %v1539
        %v1541 = vpop.f32.mrf.mxu0
        %v1542 = vadd.f32 %v470, %v1541
        %1543 = vmatprep.mubr.bf16.mxu0 0
        %1544 = vmatmul.mubr.bf16.gmra.mxu0 %v527
        %v1545 = vpop.f32.mrf.mxu0
        %v1546 = vadd.f32 %v466, %v1545
        %v1547 = vpop.f32.mrf.mxu0
        %v1548 = vadd.f32 %v470, %v1547
        %v1549 = vpop.f32.mrf.mxu0
        %v1550 = vadd.f32 %v466, %v1549
        %v1551 = vpop.f32.mrf.mxu0
        %v1552 = vadd.f32 %v470, %v1551
        %1553 = vmatprep.mubr.bf16.mxu0 0
        %1554 = vmatmul.mubr.bf16.gmra.mxu0 %v528
        %v1555 = vpop.f32.mrf.mxu0
        %v1556 = vadd.f32 %v466, %v1555
        %v1557 = vpop.f32.mrf.mxu0
        %v1558 = vadd.f32 %v470, %v1557
        %v1559 = vpop.f32.mrf.mxu0
        %v1560 = vadd.f32 %v466, %v1559
        %v1561 = vpop.f32.mrf.mxu0
        %v1562 = vadd.f32 %v470, %v1561
        %1563 = vmatprep.mubr.bf16.mxu0 0
        %1564 = vmatmul.mubr.bf16.gmra.mxu0 %v529
        %v1565 = vpop.f32.mrf.mxu0
        %v1566 = vadd.f32 %v466, %v1565
        %v1567 = vpop.f32.mrf.mxu0
        %v1568 = vadd.f32 %v470, %v1567
        %v1569 = vpop.f32.mrf.mxu0
        %v1570 = vadd.f32 %v466, %v1569
        %v1571 = vpop.f32.mrf.mxu0
        %v1572 = vadd.f32 %v470, %v1571
        %1573 = vmatprep.mubr.bf16.mxu0 0
        %1574 = vmatmul.mubr.bf16.gmra.mxu0 %v530
        %v1575 = vpop.f32.mrf.mxu0
        %v1576 = vadd.f32 %v466, %v1575
        %v1577 = vpop.f32.mrf.mxu0
        %v1578 = vadd.f32 %v470, %v1577
        %v1579 = vpop.f32.mrf.mxu0
        %v1580 = vadd.f32 %v466, %v1579
        %v1581 = vpop.f32.mrf.mxu0
        %v1582 = vadd.f32 %v470, %v1581
        %1583 = vdwg.mxu0
        %1584 = vmatprep.subr.bf16.mxu0 %v922
        %1585 = vmatpush1.bf16.msra.mxu0 %v921
        %1586 = vmatprep.subr.bf16.mxu0 %v910
        %1587 = vmatpush1.bf16.msra.mxu0 %v909
        %1588 = vmatprep.subr.bf16.mxu0 %v898
        %1589 = vmatpush1.bf16.msra.mxu0 %v897
        %1590 = vmatprep.subr.bf16.mxu0 %v886
        %1591 = vmatpush1.bf16.msra.mxu0 %v885
        %1592 = vmatprep.subr.bf16.mxu0 %v874
        %1593 = vmatpush1.bf16.msra.mxu0 %v873
        %1594 = vmatprep.subr.bf16.mxu0 %v862
        %1595 = vmatpush1.bf16.msra.mxu0 %v861
        %1596 = vmatprep.subr.bf16.mxu0 %v850
        %1597 = vmatpush1.bf16.msra.mxu0 %v849
        %1598 = vmatprep.subr.bf16.mxu0 %v838
        %1599 = vmatpush1.bf16.msra.mxu0 %v837
        %1600 = vmatprep.subr.bf16.mxu0 0
        %1601 = vmatpush2.bf16.msra.mxu0 0
        %1602 = vmatprep.subr.bf16.mxu0 0
        %1603 = vmatpush2.bf16.msra.mxu0 0
        %1604 = vmatprep.subr.bf16.mxu0 0
        %1605 = vmatpush2.bf16.msra.mxu0 0
        %1606 = vmatprep.subr.bf16.mxu0 0
        %1607 = vmatpush2.bf16.msra.mxu0 0
        %1608 = vmatprep.subr.bf16.mxu0 0
        %1609 = vmatpush2.bf16.msra.mxu0 0
        %1610 = vmatprep.subr.bf16.mxu0 0
        %1611 = vmatpush2.bf16.msra.mxu0 0
        %1612 = vmatprep.subr.bf16.mxu0 0
        %1613 = vmatpush2.bf16.msra.mxu0 0
        %1614 = vmatprep.subr.bf16.mxu0 0
        %1615 = vmatpush2.bf16.msra.mxu0 0
        %1616 = vmatprep.mubr.bf16.mxu0 0
        %1617 = vmatmul.mubr.bf16.gmra.mxu0 %v523
        %v1618 = vpop.f32.mrf.mxu0
        %v1619 = vadd.f32 %v474, %v1618
        %v1620 = vpop.f32.mrf.mxu0
        %v1621 = vadd.f32 %v478, %v1620
        %v1622 = vpop.f32.mrf.mxu0
        %v1623 = vadd.f32 %v474, %v1622
        %v1624 = vpop.f32.mrf.mxu0
        %v1625 = vadd.f32 %v478, %v1624
        %1626 = vmatprep.mubr.bf16.mxu0 0
        %1627 = vmatmul.mubr.bf16.gmra.mxu0 %v524
        %v1628 = vpop.f32.mrf.mxu0
        %v1629 = vadd.f32 %v474, %v1628
        %v1630 = vpop.f32.mrf.mxu0
        %v1631 = vadd.f32 %v478, %v1630
        %v1632 = vpop.f32.mrf.mxu0
        %v1633 = vadd.f32 %v474, %v1632
        %v1634 = vpop.f32.mrf.mxu0
        %v1635 = vadd.f32 %v478, %v1634
        %1636 = vmatprep.mubr.bf16.mxu0 0
        %1637 = vmatmul.mubr.bf16.gmra.mxu0 %v525
        %v1638 = vpop.f32.mrf.mxu0
        %v1639 = vadd.f32 %v474, %v1638
        %v1640 = vpop.f32.mrf.mxu0
        %v1641 = vadd.f32 %v478, %v1640
        %v1642 = vpop.f32.mrf.mxu0
        %v1643 = vadd.f32 %v474, %v1642
        %v1644 = vpop.f32.mrf.mxu0
        %v1645 = vadd.f32 %v478, %v1644
        %1646 = vmatprep.mubr.bf16.mxu0 0
        %1647 = vmatmul.mubr.bf16.gmra.mxu0 %v526
        %v1648 = vpop.f32.mrf.mxu0
        %v1649 = vadd.f32 %v474, %v1648
        %v1650 = vpop.f32.mrf.mxu0
        %v1651 = vadd.f32 %v478, %v1650
        %v1652 = vpop.f32.mrf.mxu0
        %v1653 = vadd.f32 %v474, %v1652
        %v1654 = vpop.f32.mrf.mxu0
        %v1655 = vadd.f32 %v478, %v1654
        %1656 = vmatprep.mubr.bf16.mxu0 0
        %1657 = vmatmul.mubr.bf16.gmra.mxu0 %v527
        %v1658 = vpop.f32.mrf.mxu0
        %v1659 = vadd.f32 %v474, %v1658
        %v1660 = vpop.f32.mrf.mxu0
        %v1661 = vadd.f32 %v478, %v1660
        %v1662 = vpop.f32.mrf.mxu0
        %v1663 = vadd.f32 %v474, %v1662
        %v1664 = vpop.f32.mrf.mxu0
        %v1665 = vadd.f32 %v478, %v1664
        %1666 = vmatprep.mubr.bf16.mxu0 0
        %1667 = vmatmul.mubr.bf16.gmra.mxu0 %v528
        %v1668 = vpop.f32.mrf.mxu0
        %v1669 = vadd.f32 %v474, %v1668
        %v1670 = vpop.f32.mrf.mxu0
        %v1671 = vadd.f32 %v478, %v1670
        %v1672 = vpop.f32.mrf.mxu0
        %v1673 = vadd.f32 %v474, %v1672
        %v1674 = vpop.f32.mrf.mxu0
        %v1675 = vadd.f32 %v478, %v1674
        %1676 = vmatprep.mubr.bf16.mxu0 0
        %1677 = vmatmul.mubr.bf16.gmra.mxu0 %v529
        %v1678 = vpop.f32.mrf.mxu0
        %v1679 = vadd.f32 %v474, %v1678
        %v1680 = vpop.f32.mrf.mxu0
        %v1681 = vadd.f32 %v478, %v1680
        %v1682 = vpop.f32.mrf.mxu0
        %v1683 = vadd.f32 %v474, %v1682
        %v1684 = vpop.f32.mrf.mxu0
        %v1685 = vadd.f32 %v478, %v1684
        %1686 = vmatprep.mubr.bf16.mxu0 0
        %1687 = vmatmul.mubr.bf16.gmra.mxu0 %v530
        %v1688 = vpop.f32.mrf.mxu0
        %v1689 = vadd.f32 %v474, %v1688
        %v1690 = vpop.f32.mrf.mxu0
        %v1691 = vadd.f32 %v478, %v1690
        %v1692 = vpop.f32.mrf.mxu0
        %v1693 = vadd.f32 %v474, %v1692
        %v1694 = vpop.f32.mrf.mxu0
        %v1695 = vadd.f32 %v478, %v1694
        %1696 = vdwg.mxu0
        %v1697 = vpack.c.bf16 %v1058, %v1054
        %v1698 = vpack.c.bf16 %v1060, %v1056
        %v1699 = vpack.c.bf16 %v1171, %v1167
        %v1700 = vpack.c.bf16 %v1173, %v1169
        %v1701 = vpack.c.bf16 %v1068, %v1064
        %v1702 = vpack.c.bf16 %v1070, %v1066
        %v1703 = vpack.c.bf16 %v1181, %v1177
        %v1704 = vpack.c.bf16 %v1183, %v1179
        %v1705 = vpack.c.bf16 %v1078, %v1074
        %v1706 = vpack.c.bf16 %v1080, %v1076
        %v1707 = vpack.c.bf16 %v1191, %v1187
        %v1708 = vpack.c.bf16 %v1193, %v1189
        %v1709 = vpack.c.bf16 %v1088, %v1084
        %v1710 = vpack.c.bf16 %v1090, %v1086
        %v1711 = vpack.c.bf16 %v1201, %v1197
        %v1712 = vpack.c.bf16 %v1203, %v1199
        %v1713 = vpack.c.bf16 %v1098, %v1094
        %v1714 = vpack.c.bf16 %v1100, %v1096
        %v1715 = vpack.c.bf16 %v1211, %v1207
        %v1716 = vpack.c.bf16 %v1213, %v1209
        %v1717 = vpack.c.bf16 %v1108, %v1104
        %v1718 = vpack.c.bf16 %v1110, %v1106
        %v1719 = vpack.c.bf16 %v1221, %v1217
        %v1720 = vpack.c.bf16 %v1223, %v1219
        %v1721 = vpack.c.bf16 %v1118, %v1114
        %v1722 = vpack.c.bf16 %v1120, %v1116
        %v1723 = vpack.c.bf16 %v1231, %v1227
        %v1724 = vpack.c.bf16 %v1233, %v1229
        %v1725 = vpack.c.bf16 %v1128, %v1124
        %v1726 = vpack.c.bf16 %v1130, %v1126
        %v1727 = vpack.c.bf16 %v1241, %v1237
        %v1728 = vpack.c.bf16 %v1243, %v1239
        %v1761 = vunpack.c.l.b16 %v1697
        %v1762 = vunpack.c.l.b16 %v1698
        %v1763 = vunpack.c.l.b16 %v1699
        %v1764 = vunpack.c.l.b16 %v1700
        %v1765 = vunpack.c.h.b16 %v1697
        %v1766 = vunpack.c.h.b16 %v1698
        %v1767 = vunpack.c.h.b16 %v1699
        %v1768 = vunpack.c.h.b16 %v1700
        %v1769 = vunpack.c.l.b16 %v1701
        %v1770 = vunpack.c.l.b16 %v1702
        %v1771 = vunpack.c.l.b16 %v1703
        %v1772 = vunpack.c.l.b16 %v1704
        %v1773 = vunpack.c.h.b16 %v1701
        %v1774 = vunpack.c.h.b16 %v1702
        %v1775 = vunpack.c.h.b16 %v1703
        %v1776 = vunpack.c.h.b16 %v1704
        %v1777 = vunpack.c.l.b16 %v1705
        %v1778 = vunpack.c.l.b16 %v1706
        %v1779 = vunpack.c.l.b16 %v1707
        %v1780 = vunpack.c.l.b16 %v1708
        %v1781 = vunpack.c.h.b16 %v1705
        %v1782 = vunpack.c.h.b16 %v1706
        %v1783 = vunpack.c.h.b16 %v1707
        %v1784 = vunpack.c.h.b16 %v1708
        %v1785 = vunpack.c.l.b16 %v1709
        %v1786 = vunpack.c.l.b16 %v1710
        %v1787 = vunpack.c.l.b16 %v1711
        %v1788 = vunpack.c.l.b16 %v1712
        %v1789 = vunpack.c.h.b16 %v1709
        %v1790 = vunpack.c.h.b16 %v1710
        %v1791 = vunpack.c.h.b16 %v1711
        %v1792 = vunpack.c.h.b16 %v1712
        %v1793 = vunpack.c.l.b16 %v1713
        %v1794 = vunpack.c.l.b16 %v1714
        %v1795 = vunpack.c.l.b16 %v1715
        %v1796 = vunpack.c.l.b16 %v1716
        %v1797 = vunpack.c.h.b16 %v1713
        %v1798 = vunpack.c.h.b16 %v1714
        %v1799 = vunpack.c.h.b16 %v1715
        %v1800 = vunpack.c.h.b16 %v1716
        %v1801 = vunpack.c.l.b16 %v1717
        %v1802 = vunpack.c.l.b16 %v1718
        %v1803 = vunpack.c.l.b16 %v1719
        %v1804 = vunpack.c.l.b16 %v1720
        %v1805 = vunpack.c.h.b16 %v1717
        %v1806 = vunpack.c.h.b16 %v1718
        %v1807 = vunpack.c.h.b16 %v1719
        %v1808 = vunpack.c.h.b16 %v1720
        %v1809 = vunpack.c.l.b16 %v1721
        %v1810 = vunpack.c.l.b16 %v1722
        %v1811 = vunpack.c.l.b16 %v1723
        %v1812 = vunpack.c.l.b16 %v1724
        %v1813 = vunpack.c.h.b16 %v1721
        %v1814 = vunpack.c.h.b16 %v1722
        %v1815 = vunpack.c.h.b16 %v1723
        %v1816 = vunpack.c.h.b16 %v1724
        %v1817 = vunpack.c.l.b16 %v1725
        %v1818 = vunpack.c.l.b16 %v1726
        %v1819 = vunpack.c.l.b16 %v1727
        %v1820 = vunpack.c.l.b16 %v1728
        %v1821 = vunpack.c.h.b16 %v1725
        %v1822 = vunpack.c.h.b16 %v1726
        %v1823 = vunpack.c.h.b16 %v1727
        %v1824 = vunpack.c.h.b16 %v1728
        %v1825 = vpack.c.b16 %v1762, %v1761
        %v1826 = vpack.c.b16 %v1764, %v1763
        %v1827 = vpack.c.b16 %v1766, %v1765
        %v1828 = vpack.c.b16 %v1768, %v1767
        %v1829 = vpack.c.b16 %v1770, %v1769
        %v1830 = vpack.c.b16 %v1772, %v1771
        %v1831 = vpack.c.b16 %v1774, %v1773
        %v1832 = vpack.c.b16 %v1776, %v1775
        %v1833 = vpack.c.b16 %v1778, %v1777
        %v1834 = vpack.c.b16 %v1780, %v1779
        %v1835 = vpack.c.b16 %v1782, %v1781
        %v1836 = vpack.c.b16 %v1784, %v1783
        %v1837 = vpack.c.b16 %v1786, %v1785
        %v1838 = vpack.c.b16 %v1788, %v1787
        %v1839 = vpack.c.b16 %v1790, %v1789
        %v1840 = vpack.c.b16 %v1792, %v1791
        %v1841 = vpack.c.b16 %v1794, %v1793
        %v1842 = vpack.c.b16 %v1796, %v1795
        %v1843 = vpack.c.b16 %v1798, %v1797
        %v1844 = vpack.c.b16 %v1800, %v1799
        %v1845 = vpack.c.b16 %v1802, %v1801
        %v1846 = vpack.c.b16 %v1804, %v1803
        %v1847 = vpack.c.b16 %v1806, %v1805
        %v1848 = vpack.c.b16 %v1808, %v1807
        %v1849 = vpack.c.b16 %v1810, %v1809
        %v1850 = vpack.c.b16 %v1812, %v1811
        %v1851 = vpack.c.b16 %v1814, %v1813
        %v1852 = vpack.c.b16 %v1816, %v1815
        %v1853 = vpack.c.b16 %v1818, %v1817
        %v1854 = vpack.c.b16 %v1820, %v1819
        %v1855 = vpack.c.b16 %v1822, %v1821
        %v1856 = vpack.c.b16 %v1824, %v1823
        %1889 = vst [vmem:[%s295] sm:$0xff] %v1825
        %1890 = vst [vmem:[%s295 + $0x8] sm:$0xff] %v1826
        %1891 = vst [vmem:[%s295 + $0x10] sm:$0xff] %v1827
        %1892 = vst [vmem:[%s295 + $0x18] sm:$0xff] %v1828
        %1893 = vst [vmem:[%s295 + $0x20] sm:$0xff] %v1829
        %1894 = vst [vmem:[%s295 + $0x28] sm:$0xff] %v1830
        %1895 = vst [vmem:[%s295 + $0x30] sm:$0xff] %v1831
        %1896 = vst [vmem:[%s295 + $0x38] sm:$0xff] %v1832
        %1897 = vst [vmem:[%s295 + $0x40] sm:$0xff] %v1833
        %1898 = vst [vmem:[%s295 + $0x48] sm:$0xff] %v1834
        %1899 = vst [vmem:[%s295 + $0x50] sm:$0xff] %v1835
        %1900 = vst [vmem:[%s295 + $0x58] sm:$0xff] %v1836
        %1901 = vst [vmem:[%s295 + $0x60] sm:$0xff] %v1837
        %1902 = vst [vmem:[%s295 + $0x68] sm:$0xff] %v1838
        %1903 = vst [vmem:[%s295 + $0x70] sm:$0xff] %v1839
        %1904 = vst [vmem:[%s295 + $0x78] sm:$0xff] %v1840
        %1905 = vst [vmem:[%s295 + $0x80] sm:$0xff] %v1841
        %1906 = vst [vmem:[%s295 + $0x88] sm:$0xff] %v1842
        %1907 = vst [vmem:[%s295 + $0x90] sm:$0xff] %v1843
        %1908 = vst [vmem:[%s295 + $0x98] sm:$0xff] %v1844
        %1909 = vst [vmem:[%s295 + $0xa0] sm:$0xff] %v1845
        %1910 = vst [vmem:[%s295 + $0xa8] sm:$0xff] %v1846
        %1911 = vst [vmem:[%s295 + $0xb0] sm:$0xff] %v1847
        %1912 = vst [vmem:[%s295 + $0xb8] sm:$0xff] %v1848
        %1913 = vst [vmem:[%s295 + $0xc0] sm:$0xff] %v1849
        %1914 = vst [vmem:[%s295 + $0xc8] sm:$0xff] %v1850
        %1915 = vst [vmem:[%s295 + $0xd0] sm:$0xff] %v1851
        %1916 = vst [vmem:[%s295 + $0xd8] sm:$0xff] %v1852
        %1917 = vst [vmem:[%s295 + $0xe0] sm:$0xff] %v1853
        %1918 = vst [vmem:[%s295 + $0xe8] sm:$0xff] %v1854
        %1919 = vst [vmem:[%s295 + $0xf0] sm:$0xff] %v1855
        %1920 = vst [vmem:[%s295 + $0xf8] sm:$0xff] %v1856
        %v1921 = vpack.c.bf16 %v1284, %v1280
        %v1922 = vpack.c.bf16 %v1286, %v1282
        %v1923 = vpack.c.bf16 %v1397, %v1393
        %v1924 = vpack.c.bf16 %v1399, %v1395
        %v1925 = vpack.c.bf16 %v1294, %v1290
        %v1926 = vpack.c.bf16 %v1296, %v1292
        %v1927 = vpack.c.bf16 %v1407, %v1403
        %v1928 = vpack.c.bf16 %v1409, %v1405
        %v1929 = vpack.c.bf16 %v1304, %v1300
        %v1930 = vpack.c.bf16 %v1306, %v1302
        %v1931 = vpack.c.bf16 %v1417, %v1413
        %v1932 = vpack.c.bf16 %v1419, %v1415
        %v1933 = vpack.c.bf16 %v1314, %v1310
        %v1934 = vpack.c.bf16 %v1316, %v1312
        %v1935 = vpack.c.bf16 %v1427, %v1423
        %v1936 = vpack.c.bf16 %v1429, %v1425
        %v1937 = vpack.c.bf16 %v1324, %v1320
        %v1938 = vpack.c.bf16 %v1326, %v1322
        %v1939 = vpack.c.bf16 %v1437, %v1433
        %v1940 = vpack.c.bf16 %v1439, %v1435
        %v1941 = vpack.c.bf16 %v1334, %v1330
        %v1942 = vpack.c.bf16 %v1336, %v1332
        %v1943 = vpack.c.bf16 %v1447, %v1443
        %v1944 = vpack.c.bf16 %v1449, %v1445
        %v1945 = vpack.c.bf16 %v1344, %v1340
        %v1946 = vpack.c.bf16 %v1346, %v1342
        %v1947 = vpack.c.bf16 %v1457, %v1453
        %v1948 = vpack.c.bf16 %v1459, %v1455
        %v1949 = vpack.c.bf16 %v1354, %v1350
        %v1950 = vpack.c.bf16 %v1356, %v1352
        %v1951 = vpack.c.bf16 %v1467, %v1463
        %v1952 = vpack.c.bf16 %v1469, %v1465
        %v1985 = vunpack.c.l.b16 %v1921
        %v1986 = vunpack.c.l.b16 %v1922
        %v1987 = vunpack.c.l.b16 %v1923
        %v1988 = vunpack.c.l.b16 %v1924
        %v1989 = vunpack.c.h.b16 %v1921
        %v1990 = vunpack.c.h.b16 %v1922
        %v1991 = vunpack.c.h.b16 %v1923
        %v1992 = vunpack.c.h.b16 %v1924
        %v1993 = vunpack.c.l.b16 %v1925
        %v1994 = vunpack.c.l.b16 %v1926
        %v1995 = vunpack.c.l.b16 %v1927
        %v1996 = vunpack.c.l.b16 %v1928
        %v1997 = vunpack.c.h.b16 %v1925
        %v1998 = vunpack.c.h.b16 %v1926
        %v1999 = vunpack.c.h.b16 %v1927
        %v2000 = vunpack.c.h.b16 %v1928
        %v2001 = vunpack.c.l.b16 %v1929
        %v2002 = vunpack.c.l.b16 %v1930
        %v2003 = vunpack.c.l.b16 %v1931
        %v2004 = vunpack.c.l.b16 %v1932
        %v2005 = vunpack.c.h.b16 %v1929
        %v2006 = vunpack.c.h.b16 %v1930
        %v2007 = vunpack.c.h.b16 %v1931
        %v2008 = vunpack.c.h.b16 %v1932
        %v2009 = vunpack.c.l.b16 %v1933
        %v2010 = vunpack.c.l.b16 %v1934
        %v2011 = vunpack.c.l.b16 %v1935
        %v2012 = vunpack.c.l.b16 %v1936
        %v2013 = vunpack.c.h.b16 %v1933
        %v2014 = vunpack.c.h.b16 %v1934
        %v2015 = vunpack.c.h.b16 %v1935
        %v2016 = vunpack.c.h.b16 %v1936
        %v2017 = vunpack.c.l.b16 %v1937
        %v2018 = vunpack.c.l.b16 %v1938
        %v2019 = vunpack.c.l.b16 %v1939
        %v2020 = vunpack.c.l.b16 %v1940
        %v2021 = vunpack.c.h.b16 %v1937
        %v2022 = vunpack.c.h.b16 %v1938
        %v2023 = vunpack.c.h.b16 %v1939
        %v2024 = vunpack.c.h.b16 %v1940
        %v2025 = vunpack.c.l.b16 %v1941
        %v2026 = vunpack.c.l.b16 %v1942
        %v2027 = vunpack.c.l.b16 %v1943
        %v2028 = vunpack.c.l.b16 %v1944
        %v2029 = vunpack.c.h.b16 %v1941
        %v2030 = vunpack.c.h.b16 %v1942
        %v2031 = vunpack.c.h.b16 %v1943
        %v2032 = vunpack.c.h.b16 %v1944
        %v2033 = vunpack.c.l.b16 %v1945
        %v2034 = vunpack.c.l.b16 %v1946
        %v2035 = vunpack.c.l.b16 %v1947
        %v2036 = vunpack.c.l.b16 %v1948
        %v2037 = vunpack.c.h.b16 %v1945
        %v2038 = vunpack.c.h.b16 %v1946
        %v2039 = vunpack.c.h.b16 %v1947
        %v2040 = vunpack.c.h.b16 %v1948
        %v2041 = vunpack.c.l.b16 %v1949
        %v2042 = vunpack.c.l.b16 %v1950
        %v2043 = vunpack.c.l.b16 %v1951
        %v2044 = vunpack.c.l.b16 %v1952
        %v2045 = vunpack.c.h.b16 %v1949
        %v2046 = vunpack.c.h.b16 %v1950
        %v2047 = vunpack.c.h.b16 %v1951
        %v2048 = vunpack.c.h.b16 %v1952
        %v2049 = vpack.c.b16 %v1986, %v1985
        %v2050 = vpack.c.b16 %v1988, %v1987
        %v2051 = vpack.c.b16 %v1990, %v1989
        %v2052 = vpack.c.b16 %v1992, %v1991
        %v2053 = vpack.c.b16 %v1994, %v1993
        %v2054 = vpack.c.b16 %v1996, %v1995
        %v2055 = vpack.c.b16 %v1998, %v1997
        %v2056 = vpack.c.b16 %v2000, %v1999
        %v2057 = vpack.c.b16 %v2002, %v2001
        %v2058 = vpack.c.b16 %v2004, %v2003
        %v2059 = vpack.c.b16 %v2006, %v2005
        %v2060 = vpack.c.b16 %v2008, %v2007
        %v2061 = vpack.c.b16 %v2010, %v2009
        %v2062 = vpack.c.b16 %v2012, %v2011
        %v2063 = vpack.c.b16 %v2014, %v2013
        %v2064 = vpack.c.b16 %v2016, %v2015
        %v2065 = vpack.c.b16 %v2018, %v2017
        %v2066 = vpack.c.b16 %v2020, %v2019
        %v2067 = vpack.c.b16 %v2022, %v2021
        %v2068 = vpack.c.b16 %v2024, %v2023
        %v2069 = vpack.c.b16 %v2026, %v2025
        %v2070 = vpack.c.b16 %v2028, %v2027
        %v2071 = vpack.c.b16 %v2030, %v2029
        %v2072 = vpack.c.b16 %v2032, %v2031
        %v2073 = vpack.c.b16 %v2034, %v2033
        %v2074 = vpack.c.b16 %v2036, %v2035
        %v2075 = vpack.c.b16 %v2038, %v2037
        %v2076 = vpack.c.b16 %v2040, %v2039
        %v2077 = vpack.c.b16 %v2042, %v2041
        %v2078 = vpack.c.b16 %v2044, %v2043
        %v2079 = vpack.c.b16 %v2046, %v2045
        %v2080 = vpack.c.b16 %v2048, %v2047
        %2113 = vst [vmem:[%s302] sm:$0xff] %v2049
        %2114 = vst [vmem:[%s302 + $0x8] sm:$0xff] %v2050
        %2115 = vst [vmem:[%s302 + $0x10] sm:$0xff] %v2051
        %2116 = vst [vmem:[%s302 + $0x18] sm:$0xff] %v2052
        %2117 = vst [vmem:[%s302 + $0x20] sm:$0xff] %v2053
        %2118 = vst [vmem:[%s302 + $0x28] sm:$0xff] %v2054
        %2119 = vst [vmem:[%s302 + $0x30] sm:$0xff] %v2055
        %2120 = vst [vmem:[%s302 + $0x38] sm:$0xff] %v2056
        %2121 = vst [vmem:[%s302 + $0x40] sm:$0xff] %v2057
        %2122 = vst [vmem:[%s302 + $0x48] sm:$0xff] %v2058
        %2123 = vst [vmem:[%s302 + $0x50] sm:$0xff] %v2059
        %2124 = vst [vmem:[%s302 + $0x58] sm:$0xff] %v2060
        %2125 = vst [vmem:[%s302 + $0x60] sm:$0xff] %v2061
        %2126 = vst [vmem:[%s302 + $0x68] sm:$0xff] %v2062
        %2127 = vst [vmem:[%s302 + $0x70] sm:$0xff] %v2063
        %2128 = vst [vmem:[%s302 + $0x78] sm:$0xff] %v2064
        %2129 = vst [vmem:[%s302 + $0x80] sm:$0xff] %v2065
        %2130 = vst [vmem:[%s302 + $0x88] sm:$0xff] %v2066
        %2131 = vst [vmem:[%s302 + $0x90] sm:$0xff] %v2067
        %2132 = vst [vmem:[%s302 + $0x98] sm:$0xff] %v2068
        %2133 = vst [vmem:[%s302 + $0xa0] sm:$0xff] %v2069
        %2134 = vst [vmem:[%s302 + $0xa8] sm:$0xff] %v2070
        %2135 = vst [vmem:[%s302 + $0xb0] sm:$0xff] %v2071
        %2136 = vst [vmem:[%s302 + $0xb8] sm:$0xff] %v2072
        %2137 = vst [vmem:[%s302 + $0xc0] sm:$0xff] %v2073
        %2138 = vst [vmem:[%s302 + $0xc8] sm:$0xff] %v2074
        %2139 = vst [vmem:[%s302 + $0xd0] sm:$0xff] %v2075
        %2140 = vst [vmem:[%s302 + $0xd8] sm:$0xff] %v2076
        %2141 = vst [vmem:[%s302 + $0xe0] sm:$0xff] %v2077
        %2142 = vst [vmem:[%s302 + $0xe8] sm:$0xff] %v2078
        %2143 = vst [vmem:[%s302 + $0xf0] sm:$0xff] %v2079
        %2144 = vst [vmem:[%s302 + $0xf8] sm:$0xff] %v2080
        %v2145 = vpack.c.bf16 %v1510, %v1506
        %v2146 = vpack.c.bf16 %v1512, %v1508
        %v2147 = vpack.c.bf16 %v1623, %v1619
        %v2148 = vpack.c.bf16 %v1625, %v1621
        %v2149 = vpack.c.bf16 %v1520, %v1516
        %v2150 = vpack.c.bf16 %v1522, %v1518
        %v2151 = vpack.c.bf16 %v1633, %v1629
        %v2152 = vpack.c.bf16 %v1635, %v1631
        %v2153 = vpack.c.bf16 %v1530, %v1526
        %v2154 = vpack.c.bf16 %v1532, %v1528
        %v2155 = vpack.c.bf16 %v1643, %v1639
        %v2156 = vpack.c.bf16 %v1645, %v1641
        %v2157 = vpack.c.bf16 %v1540, %v1536
        %v2158 = vpack.c.bf16 %v1542, %v1538
        %v2159 = vpack.c.bf16 %v1653, %v1649
        %v2160 = vpack.c.bf16 %v1655, %v1651
        %v2161 = vpack.c.bf16 %v1550, %v1546
        %v2162 = vpack.c.bf16 %v1552, %v1548
        %v2163 = vpack.c.bf16 %v1663, %v1659
        %v2164 = vpack.c.bf16 %v1665, %v1661
        %v2165 = vpack.c.bf16 %v1560, %v1556
        %v2166 = vpack.c.bf16 %v1562, %v1558
        %v2167 = vpack.c.bf16 %v1673, %v1669
        %v2168 = vpack.c.bf16 %v1675, %v1671
        %v2169 = vpack.c.bf16 %v1570, %v1566
        %v2170 = vpack.c.bf16 %v1572, %v1568
        %v2171 = vpack.c.bf16 %v1683, %v1679
        %v2172 = vpack.c.bf16 %v1685, %v1681
        %v2173 = vpack.c.bf16 %v1580, %v1576
        %v2174 = vpack.c.bf16 %v1582, %v1578
        %v2175 = vpack.c.bf16 %v1693, %v1689
        %v2176 = vpack.c.bf16 %v1695, %v1691
        %v2209 = vunpack.c.l.b16 %v2145
        %v2210 = vunpack.c.l.b16 %v2146
        %v2211 = vunpack.c.l.b16 %v2147
        %v2212 = vunpack.c.l.b16 %v2148
        %v2213 = vunpack.c.h.b16 %v2145
        %v2214 = vunpack.c.h.b16 %v2146
        %v2215 = vunpack.c.h.b16 %v2147
        %v2216 = vunpack.c.h.b16 %v2148
        %v2217 = vunpack.c.l.b16 %v2149
        %v2218 = vunpack.c.l.b16 %v2150
        %v2219 = vunpack.c.l.b16 %v2151
        %v2220 = vunpack.c.l.b16 %v2152
        %v2221 = vunpack.c.h.b16 %v2149
        %v2222 = vunpack.c.h.b16 %v2150
        %v2223 = vunpack.c.h.b16 %v2151
        %v2224 = vunpack.c.h.b16 %v2152
        %v2225 = vunpack.c.l.b16 %v2153
        %v2226 = vunpack.c.l.b16 %v2154
        %v2227 = vunpack.c.l.b16 %v2155
        %v2228 = vunpack.c.l.b16 %v2156
        %v2229 = vunpack.c.h.b16 %v2153
        %v2230 = vunpack.c.h.b16 %v2154
        %v2231 = vunpack.c.h.b16 %v2155
        %v2232 = vunpack.c.h.b16 %v2156
        %v2233 = vunpack.c.l.b16 %v2157
        %v2234 = vunpack.c.l.b16 %v2158
        %v2235 = vunpack.c.l.b16 %v2159
        %v2236 = vunpack.c.l.b16 %v2160
        %v2237 = vunpack.c.h.b16 %v2157
        %v2238 = vunpack.c.h.b16 %v2158
        %v2239 = vunpack.c.h.b16 %v2159
        %v2240 = vunpack.c.h.b16 %v2160
        %v2241 = vunpack.c.l.b16 %v2161
        %v2242 = vunpack.c.l.b16 %v2162
        %v2243 = vunpack.c.l.b16 %v2163
        %v2244 = vunpack.c.l.b16 %v2164
        %v2245 = vunpack.c.h.b16 %v2161
        %v2246 = vunpack.c.h.b16 %v2162
        %v2247 = vunpack.c.h.b16 %v2163
        %v2248 = vunpack.c.h.b16 %v2164
        %v2249 = vunpack.c.l.b16 %v2165
        %v2250 = vunpack.c.l.b16 %v2166
        %v2251 = vunpack.c.l.b16 %v2167
        %v2252 = vunpack.c.l.b16 %v2168
        %v2253 = vunpack.c.h.b16 %v2165
        %v2254 = vunpack.c.h.b16 %v2166
        %v2255 = vunpack.c.h.b16 %v2167
        %v2256 = vunpack.c.h.b16 %v2168
        %v2257 = vunpack.c.l.b16 %v2169
        %v2258 = vunpack.c.l.b16 %v2170
        %v2259 = vunpack.c.l.b16 %v2171
        %v2260 = vunpack.c.l.b16 %v2172
        %v2261 = vunpack.c.h.b16 %v2169
        %v2262 = vunpack.c.h.b16 %v2170
        %v2263 = vunpack.c.h.b16 %v2171
        %v2264 = vunpack.c.h.b16 %v2172
        %v2265 = vunpack.c.l.b16 %v2173
        %v2266 = vunpack.c.l.b16 %v2174
        %v2267 = vunpack.c.l.b16 %v2175
        %v2268 = vunpack.c.l.b16 %v2176
        %v2269 = vunpack.c.h.b16 %v2173
        %v2270 = vunpack.c.h.b16 %v2174
        %v2271 = vunpack.c.h.b16 %v2175
        %v2272 = vunpack.c.h.b16 %v2176
        %v2273 = vpack.c.b16 %v2210, %v2209
        %v2274 = vpack.c.b16 %v2212, %v2211
        %v2275 = vpack.c.b16 %v2214, %v2213
        %v2276 = vpack.c.b16 %v2216, %v2215
        %v2277 = vpack.c.b16 %v2218, %v2217
        %v2278 = vpack.c.b16 %v2220, %v2219
        %v2279 = vpack.c.b16 %v2222, %v2221
        %v2280 = vpack.c.b16 %v2224, %v2223
        %v2281 = vpack.c.b16 %v2226, %v2225
        %v2282 = vpack.c.b16 %v2228, %v2227
        %v2283 = vpack.c.b16 %v2230, %v2229
        %v2284 = vpack.c.b16 %v2232, %v2231
        %v2285 = vpack.c.b16 %v2234, %v2233
        %v2286 = vpack.c.b16 %v2236, %v2235
        %v2287 = vpack.c.b16 %v2238, %v2237
        %v2288 = vpack.c.b16 %v2240, %v2239
        %v2289 = vpack.c.b16 %v2242, %v2241
        %v2290 = vpack.c.b16 %v2244, %v2243
        %v2291 = vpack.c.b16 %v2246, %v2245
        %v2292 = vpack.c.b16 %v2248, %v2247
        %v2293 = vpack.c.b16 %v2250, %v2249
        %v2294 = vpack.c.b16 %v2252, %v2251
        %v2295 = vpack.c.b16 %v2254, %v2253
        %v2296 = vpack.c.b16 %v2256, %v2255
        %v2297 = vpack.c.b16 %v2258, %v2257
        %v2298 = vpack.c.b16 %v2260, %v2259
        %v2299 = vpack.c.b16 %v2262, %v2261
        %v2300 = vpack.c.b16 %v2264, %v2263
        %v2301 = vpack.c.b16 %v2266, %v2265
        %v2302 = vpack.c.b16 %v2268, %v2267
        %v2303 = vpack.c.b16 %v2270, %v2269
        %v2304 = vpack.c.b16 %v2272, %v2271
        %2337 = vst [vmem:[%s309] sm:$0xff] %v2273
        %2338 = vst [vmem:[%s309 + $0x8] sm:$0xff] %v2274
        %2339 = vst [vmem:[%s309 + $0x10] sm:$0xff] %v2275
        %2340 = vst [vmem:[%s309 + $0x18] sm:$0xff] %v2276
        %2341 = vst [vmem:[%s309 + $0x20] sm:$0xff] %v2277
        %2342 = vst [vmem:[%s309 + $0x28] sm:$0xff] %v2278
        %2343 = vst [vmem:[%s309 + $0x30] sm:$0xff] %v2279
        %2344 = vst [vmem:[%s309 + $0x38] sm:$0xff] %v2280
        %2345 = vst [vmem:[%s309 + $0x40] sm:$0xff] %v2281
        %2346 = vst [vmem:[%s309 + $0x48] sm:$0xff] %v2282
        %2347 = vst [vmem:[%s309 + $0x50] sm:$0xff] %v2283
        %2348 = vst [vmem:[%s309 + $0x58] sm:$0xff] %v2284
        %2349 = vst [vmem:[%s309 + $0x60] sm:$0xff] %v2285
        %2350 = vst [vmem:[%s309 + $0x68] sm:$0xff] %v2286
        %2351 = vst [vmem:[%s309 + $0x70] sm:$0xff] %v2287
        %2352 = vst [vmem:[%s309 + $0x78] sm:$0xff] %v2288
        %2353 = vst [vmem:[%s309 + $0x80] sm:$0xff] %v2289
        %2354 = vst [vmem:[%s309 + $0x88] sm:$0xff] %v2290
        %2355 = vst [vmem:[%s309 + $0x90] sm:$0xff] %v2291
        %2356 = vst [vmem:[%s309 + $0x98] sm:$0xff] %v2292
        %2357 = vst [vmem:[%s309 + $0xa0] sm:$0xff] %v2293
        %2358 = vst [vmem:[%s309 + $0xa8] sm:$0xff] %v2294
        %2359 = vst [vmem:[%s309 + $0xb0] sm:$0xff] %v2295
        %2360 = vst [vmem:[%s309 + $0xb8] sm:$0xff] %v2296
        %2361 = vst [vmem:[%s309 + $0xc0] sm:$0xff] %v2297
        %2362 = vst [vmem:[%s309 + $0xc8] sm:$0xff] %v2298
        %2363 = vst [vmem:[%s309 + $0xd0] sm:$0xff] %v2299
        %2364 = vst [vmem:[%s309 + $0xd8] sm:$0xff] %v2300
        %2365 = vst [vmem:[%s309 + $0xe0] sm:$0xff] %v2301
        %2366 = vst [vmem:[%s309 + $0xe8] sm:$0xff] %v2302
        %2367 = vst [vmem:[%s309 + $0xf0] sm:$0xff] %v2303
        %2368 = vst [vmem:[%s309 + $0xf8] sm:$0xff] %v2304
        %s2369 = sand.u32 %s119, 1
        %s2370 = scalar_lea.sflag [#allocation4], %s2369
        %s2371 = sand.u32 %s119, 1
        %s2372 = smul.addr %s2371, 256
        %s2373 = scalar_lea.vmem [#allocation8], %s2372
        %s2374 = sand.u32 %s27, 1
        %s2375 = scalar_lea.sflag [#allocation10], %s2374
        %s2376 = sand.u32 %s147, 1
        %s2377 = smul.addr %s2376, 256
        %s2378 = scalar_lea.vmem [#allocation9], %s2377
        %s2379 = sand.u32 %s27, 1
        %s2380 = scalar_lea.sflag [#allocation10], %s2379
        %s2381 = sand.u32 %s175, 1
        %s2382 = smul.addr %s2381, 256
        %s2383 = scalar_lea.vmem [#allocation11], %s2382
        // Predicated region
        $region45: #{tpu_custom_call.1} parent=31 // pred_check
          %p2384 = pneg %p129
        $region46: #{tpu_custom_call.1} parent=31 // pred_check_branch
          %2386 = sbr.rel (%p2384) target = $region48
        $region47: #{tpu_custom_call.1} parent=31 // pred_region
          %s2387 = smul.u32 16, %s32
          %s2389 = ssub.s32 4096, 4096
          %2390 = vsyncadd %s2370, %s2389
          %s2391 = smul.addr %s2387, 4
          %s2392 = smul.addr %s31, 64
          %s2393 = sadd.s32 %s2391, %s2392
          %s2394 = smul.addr %s2393, 64
          %s2395 = scalar_lea.hbm %s3, %s2394
          %s2396 = sshll.u32 %s2373, 4
          %s2397 = int_to_ptr.vmem [resolvable:$true] %s2396
          %2402 = dma.vmem_to_hbm [thread:$0]  %s2397, 4096, %s2395, %s2370, 256, 256, 16
        $region48: #{tpu_custom_call.1} parent=31 // pred_fallthru
          _
        // Predicated region
        $region49: #{tpu_custom_call.1} parent=31 // pred_check
          %p2403 = pneg %p157
        $region50: #{tpu_custom_call.1} parent=31 // pred_check_branch
          %2405 = sbr.rel (%p2403) target = $region52
        $region51: #{tpu_custom_call.1} parent=31 // pred_region
          %s2406 = smul.u32 16, %s32
          %s2408 = ssub.s32 4096, 4096
          %2409 = vsyncadd %s2375, %s2408
          %s2410 = smul.addr %s2406, 4
          %s2411 = smul.addr %s31, 64
          %s2412 = sadd.s32 %s2410, %s2411
          %s2413 = smul.addr %s2412, 64
          %s2414 = scalar_lea.hbm %s4, %s2413
          %s2415 = sshll.u32 %s2378, 4
          %s2416 = int_to_ptr.vmem [resolvable:$true] %s2415
          %2421 = dma.vmem_to_hbm [thread:$0]  %s2416, 4096, %s2414, %s2375, 256, 256, 16
        $region52: #{tpu_custom_call.1} parent=31 // pred_fallthru
          _
        // Predicated region
        $region53: #{tpu_custom_call.1} parent=31 // pred_check
          %p2422 = pneg %p185
        $region54: #{tpu_custom_call.1} parent=31 // pred_check_branch
          %2424 = sbr.rel (%p2422) target = $region56
        $region55: #{tpu_custom_call.1} parent=31 // pred_region
          %s2425 = smul.u32 16, %s32
          %s2427 = ssub.s32 4096, 4096
          %2428 = vsyncadd %s2380, %s2427
          %s2429 = smul.addr %s2425, 4
          %s2430 = smul.addr %s31, 64
          %s2431 = sadd.s32 %s2429, %s2430
          %s2432 = smul.addr %s2431, 64
          %s2433 = scalar_lea.hbm %s5, %s2432
          %s2434 = sshll.u32 %s2383, 4
          %s2435 = int_to_ptr.vmem [resolvable:$true] %s2434
          %2440 = dma.vmem_to_hbm [thread:$0]  %s2435, 4096, %s2433, %s2380, 256, 256, 16
        $region56: #{tpu_custom_call.1} parent=31 // pred_fallthru
          _
      $region32: #{tpu_custom_call.1} parent=5 // pred_fallthru
        _
      %p2441 = scmp.le.s32.totalorder 2, %s22
      // Predicated region
      $region57: #{tpu_custom_call.1} parent=5 // pred_check
        %p2442 = pneg %p2441
      $region58: #{tpu_custom_call.1} parent=5 // pred_check_branch
        %2444 = sbr.rel (%p2442) target = $region60
      $region59: #{tpu_custom_call.1} parent=5 // pred_region
        %s2445 = ssub.s32 %s22, 2
        // Predicated region
        $region61: #{tpu_custom_call.1} parent=59 // pred_check
          %p2446 = pneg %p135
        $region62: #{tpu_custom_call.1} parent=59 // pred_check_branch
          %2448 = sbr.rel (%p2446) target = $region64
        $region63: #{tpu_custom_call.1} parent=59 // pred_region
          %s2449 = sand.u32 %s120, 1
          %s2450 = scalar_lea.sflag [#allocation4], %s2449
          %s2451 = sand.u32 %s120, 1
          %s2452 = smul.addr %s2451, 256
          %s2453 = scalar_lea.vmem [#allocation8], %s2452
          %2454 = dma.done %s2450, 4096
        $region64: #{tpu_custom_call.1} parent=59 // pred_fallthru
          _
        // Predicated region
        $region65: #{tpu_custom_call.1} parent=59 // pred_check
          %p2455 = pneg %p163
        $region66: #{tpu_custom_call.1} parent=59 // pred_check_branch
          %2457 = sbr.rel (%p2455) target = $region68
        $region67: #{tpu_custom_call.1} parent=59 // pred_region
          %s2458 = sand.u32 %s28, 1
          %s2459 = scalar_lea.sflag [#allocation10], %s2458
          %s2460 = sand.u32 %s148, 1
          %s2461 = smul.addr %s2460, 256
          %s2462 = scalar_lea.vmem [#allocation9], %s2461
          %2463 = dma.done %s2459, 4096
        $region68: #{tpu_custom_call.1} parent=59 // pred_fallthru
          _
        // Predicated region
        $region69: #{tpu_custom_call.1} parent=59 // pred_check
          %p2464 = pneg %p191
        $region70: #{tpu_custom_call.1} parent=59 // pred_check_branch
          %2466 = sbr.rel (%p2464) target = $region72
        $region71: #{tpu_custom_call.1} parent=59 // pred_region
          %s2467 = sand.u32 %s28, 1
          %s2468 = scalar_lea.sflag [#allocation10], %s2467
          %s2469 = sand.u32 %s176, 1
          %s2470 = smul.addr %s2469, 256
          %s2471 = scalar_lea.vmem [#allocation11], %s2470
          %2472 = dma.done %s2468, 4096
        $region72: #{tpu_custom_call.1} parent=59 // pred_fallthru
          _
      $region60: #{tpu_custom_call.1} parent=5 // pred_fallthru
        _
    $region6: #{tpu_custom_call.1} parent=1 // loop_footer
      %s26 = sadd.s32 1, %s22
    $region7: #{tpu_custom_call.1} parent=1 // loop_footer_branch
      %21 = sbr.rel target = $region3
    $region8: #{tpu_custom_call.1} parent=1 // loop_exit
      _
    %2473 = vsyncpa [#allocation3], 1
    %s2474 = scalar_lea.sflag [#allocation3], 1
    %2475 = vsyncpa %s2474, 1
    %2476 = vsyncpa [#allocation6], 1
    %2477 = vsyncpa [#allocation4], 1
    %s2478 = scalar_lea.sflag [#allocation4], 1
    %2479 = vsyncpa %s2478, 1
    %2480 = vsyncpa [#allocation10], 1
    %s2481 = scalar_lea.sflag [#allocation10], 1
    %2482 = vsyncpa %s2481, 1

</llo_original>
